<compile_context>
chip_gen: v5e
topology: v5e:2x2
jax: 0.10.0
libtpu: 0.0.40
codegen_flags: <defaults>
</compile_context>

<pallas_src>
import math
from functools import partial

import jax
import jax.numpy as jnp
from jax.experimental import pallas as pl
from jax.experimental.pallas import tpu as pltpu


_LANE = 128          # lane width: last dim of every block kept a multiple of this
_EPS = 1e-5


def _round_up(n: int, m: int) -> int:
    return ((n + m - 1) // m) * m


def _cdiv(a: int, b: int) -> int:
    return -(-a // b)


_VMEM_CAP_CACHE = []


def _vmem_cap_bytes() -> int:
    """Physical VMEM per TensorCore (generation-aware), with a safe fallback."""
    if not _VMEM_CAP_CACHE:
        cap = 64 << 20                      # conservative: v7x has the smallest VMEM
        try:
            info = pltpu.get_tpu_info()
            q = int(getattr(info, "vmem_capacity_bytes"))
            if q > 0:
                cap = q
        except Exception:
            pass
        _VMEM_CAP_CACHE.append(cap)
    return _VMEM_CAP_CACHE[0]


def _invariant_spec(shape):
    """Grid-invariant block (constant index_map -> no re-DMA): single-buffered."""
    try:
        return pl.BlockSpec(shape, lambda i: (0,) * len(shape),
                            pipeline_mode=pl.Buffered(1))
    except TypeError:
        # Older BlockSpec without pipeline_mode: fall back to default buffering.
        return pl.BlockSpec(shape, lambda i: (0,) * len(shape))


def mlp_block_kernel(x_ref, w1_ref, w2_ref, gamma_ref, beta_ref, o_ref, *,
                     n_valid_f: int, exact_gelu: bool, mxu_bf16: bool):
    x = x_ref[...]                                          # (TB, F_pad) storage dtype

    # --- Matmul 1 (MXU).  Optionally cast f32 operands to bf16 (full MXU rate
    #     on v5e/v6e/v7x); accumulation is always f32 via preferred_element_type.
    a, w1 = x, w1_ref[...]
    if mxu_bf16 and a.dtype == jnp.float32:
        a = a.astype(jnp.bfloat16)
    if mxu_bf16 and w1.dtype == jnp.float32:
        w1 = w1.astype(jnp.bfloat16)
    h = jnp.dot(a, w1, preferred_element_type=jnp.float32)  # (TB, H_pad) f32

    # --- GELU (f32).
    if exact_gelu:
        # Exact erf GELU == nn.GELU() default numerics (long VPU polynomial).
        h = 0.5 * h * (1.0 + jax.lax.erf(h * (1.0 / math.sqrt(2.0))))
    else:
        # tanh-approximate GELU: tanh issues on the EUP slot, freeing the VALU.
        c = math.sqrt(2.0 / math.pi)
        h = 0.5 * h * (1.0 + jnp.tanh(c * (h + 0.044715 * (h * h * h))))

    # --- Matmul 2 (MXU), f32 accumulation.
    w2 = w2_ref[...]
    if mxu_bf16 and w2.dtype == jnp.float32:
        w2 = w2.astype(jnp.bfloat16)
    y = jnp.dot(h.astype(w2.dtype), w2, preferred_element_type=jnp.float32)

    # --- Residual (f32).
    y = y + x.astype(jnp.float32)

    # --- One-pass LayerNorm over the valid features.
    # Padded columns of y are exactly zero by construction (zero-padded x
    # columns and zero-padded W2 output columns in prepare_mlp_block_params),
    # so unmasked sums over F_pad equal the masked sums over the F valid
    # columns; only the normalizer uses 1/F.  No iota / mask / centered pass.
    inv_n = 1.0 / float(n_valid_f)
    s1 = jnp.sum(y, axis=-1, keepdims=True)
    s2 = jnp.sum(y * y, axis=-1, keepdims=True)
    mean = s1 * inv_n
    var = s2 * inv_n - mean * mean                          # E[y^2] - E[y]^2
    y_hat = (y - mean) * jax.lax.rsqrt(var + _EPS)

    out = (y_hat * gamma_ref[...].astype(jnp.float32)
           + beta_ref[...].astype(jnp.float32))
    o_ref[...] = out.astype(o_ref.dtype)


def prepare_mlp_block_params(w1, w2, gamma, beta):
    """Pad parameters to lane-dense shapes ONCE, outside the per-call hot path.

    w1: [F, H], w2: [H, F] (pre-transposed vs. PyTorch's [out, in]),
    gamma/beta: [F].  The zero padding here is what makes the unmasked
    LayerNorm sums inside the kernel exact -- do not pass pre-padded params
    with non-zero padding lanes.
    """
    F, H = w1.shape
    assert w2.shape == (H, F) and gamma.shape == (F,) and beta.shape == (F,)
    F_pad = _round_up(F, _LANE)
    H_pad = _round_up(H, _LANE)
    w1_p = jnp.pad(w1, ((0, F_pad - F), (0, H_pad - H)))
    w2_p = jnp.pad(w2, ((0, H_pad - H), (0, F_pad - F)))
    gamma_p = jnp.pad(gamma.reshape(1, F), ((0, 0), (0, F_pad - F)))
    beta_p = jnp.pad(beta.reshape(1, F), ((0, 0), (0, F_pad - F)))
    return (w1_p, w2_p, gamma_p, beta_p), (F, H)


@partial(jax.jit, static_argnames=("tile_b", "exact_gelu", "mxu_bf16"))
def mlp_block_pallas(x, w1_p, w2_p, gamma_p, beta_p, *,
                     tile_b: int = 256, exact_gelu: bool = False,
                     mxu_bf16: bool = False):
    """x: [B, F] (unpadded); padded params from prepare_mlp_block_params."""
    B, F = x.shape
    F_pad, H_pad = w1_p.shape
    assert w2_p.shape == (H_pad, F_pad)
    assert gamma_p.shape == (1, F_pad) and beta_p.shape == (1, F_pad)
    assert F <= F_pad and F_pad % _LANE == 0 and H_pad % _LANE == 0

    x_bytes = jnp.dtype(x.dtype).itemsize
    w_bytes = jnp.dtype(w1_p.dtype).itemsize

    # Sublane granularity: 8 rows for 32-bit storage, 16 for 16-bit storage.
    sub = 16 if x_bytes < 4 else 8

    # Adaptive batch tile.  Default 256 rows fills the 256x256 MXU M dim and
    # amortizes the ~0.35 us per-grid-step pipeline overhead; clamp down for
    # tiny batches, and keep >= 2 grid steps whenever the batch allows it so
    # the "parallel" batch axis can shard across v7x's two TensorCores.
    tile_b_eff = max(sub, min(_round_up(tile_b, sub), _round_up(B, sub)))
    if _cdiv(_round_up(B, sub), tile_b_eff) < 2 and B > sub:
        tile_b_eff = max(sub, _round_up(_cdiv(B, 2), sub))
    B_pad = _round_up(B, tile_b_eff)

    # Only the activation is padded per call (weights were padded once).
    x_p = jnp.pad(x, ((0, B_pad - B), (0, F_pad - F)))

    grid = (B_pad // tile_b_eff,)

    cost = pl.CostEstimate(
        flops=4 * B_pad * F_pad * H_pad,                    # two matmuls
        transcendentals=B_pad * H_pad,                      # erf / tanh in GELU
        bytes_accessed=(2 * B_pad * F_pad * x_bytes
                        + (F_pad * H_pad + H_pad * F_pad) * w_bytes
                        + 2 * F_pad * 4))

    # VMEM budget: double-buffered x / out tiles + single-buffered resident
    # weights (Buffered(1)) + ~4 live (TB, max(F,H)) f32 temporaries (h, y,
    # y*y, y_hat).
    est_vmem = (2 * tile_b_eff * F_pad * x_bytes            # x tiles
                + 2 * tile_b_eff * F_pad * x_bytes          # out tiles
                + (F_pad * H_pad + H_pad * F_pad) * w_bytes # weights (single-buffered)
                + 4 * F_pad * 4                             # gamma / beta
                + 4 * tile_b_eff * max(F_pad, H_pad) * 4)   # f32 temps
    # Generation-aware scoped-VMEM limit: always set it (v5e's default scoped
    # limit is only 16 MiB) but never request more than ~85% of the physical
    # VMEM (v7x has only 64 MiB per TensorCore).
    cap = _vmem_cap_bytes()
    vmem_limit = int(min(max(int(est_vmem * 1.25) + (8 << 20), 32 << 20),
                         int(cap * 0.85)))

    # TODO(synk): for very large H (resident W1/W2 approaching ~40 MiB even
    # single-buffered, i.e. v7x's VMEM wall) add an "arbitrary" grid axis over
    # H with an f32 VMEM scratch accumulator (pl.when init/finalize); not
    # needed at these widths.
    out_p = pl.pallas_call(
        partial(mlp_block_kernel, n_valid_f=F, exact_gelu=exact_gelu,
                mxu_bf16=mxu_bf16),
        out_shape=jax.ShapeDtypeStruct((B_pad, F_pad), x.dtype),
        grid_spec=pltpu.PrefetchScalarGridSpec(
            num_scalar_prefetch=0,
            grid=grid,
            in_specs=[
                pl.BlockSpec((tile_b_eff, F_pad), lambda i: (i, 0)),  # x tile
                _invariant_spec((F_pad, H_pad)),                      # W1 (resident)
                _invariant_spec((H_pad, F_pad)),                      # W2 (resident)
                _invariant_spec((1, F_pad)),                          # gamma
                _invariant_spec((1, F_pad)),                          # beta
            ],
            out_specs=pl.BlockSpec((tile_b_eff, F_pad), lambda i: (i, 0)),
        ),
        compiler_params=pltpu.CompilerParams(
            dimension_semantics=("parallel",),   # batch tiles shard over v7x's 2 TCs
            vmem_limit_bytes=vmem_limit),
        cost_estimate=cost,
    )(x_p, w1_p, w2_p, gamma_p, beta_p)

    return out_p[:B, :F]


def mlp_block_ref(x, w1, w2, gamma, beta, *, approximate: bool = False):
    """Pure-JAX reference matching PyTorch MLPBlock.forward."""
    xf = x.astype(jnp.float32)
    h = xf @ w1.astype(jnp.float32)
    if approximate:
        c = math.sqrt(2.0 / math.pi)
        h = 0.5 * h * (1.0 + jnp.tanh(c * (h + 0.044715 * h ** 3)))
    else:
        h = 0.5 * h * (1.0 + jax.lax.erf(h / jnp.sqrt(2.0)))
    y = h @ w2.astype(jnp.float32) + xf
    mean = jnp.mean(y, axis=-1, keepdims=True)
    var = jnp.mean((y - mean) ** 2, axis=-1, keepdims=True)
    return ((y - mean) / jnp.sqrt(var + _EPS)) * gamma + beta


if __name__ == "__main__":
    B = 256     # 2 batch tiles of 128 -> both v7x TensorCores get work
    F = 32      # in_features == out_features (residual requires it)
    MULT = 2
    H = F * MULT

    key = jax.random.PRNGKey(0)
    kx, kw1, kw2 = jax.random.split(key, 3)

    x = jax.random.normal(kx, (B, F), dtype=jnp.float32)

    # Deterministic parameter init (Kaiming-uniform-ish bounds like nn.Linear).
    lim1 = 1.0 / math.sqrt(F)
    lim2 = 1.0 / math.sqrt(H)
    # Weights stored pre-transposed: W1:[F,H], W2:[H,F] (PyTorch keeps [out,in]).
    w1 = jax.random.uniform(kw1, (F, H), minval=-lim1, maxval=lim1, dtype=jnp.float32)
    w2 = jax.random.uniform(kw2, (H, F), minval=-lim2, maxval=lim2, dtype=jnp.float32)
    gamma = jnp.ones((F,), dtype=jnp.float32)   # LayerNorm default init
    beta = jnp.zeros((F,), dtype=jnp.float32)

    ref_exact = mlp_block_ref(x, w1, w2, gamma, beta, approximate=False)
    ref_tanh = mlp_block_ref(x, w1, w2, gamma, beta, approximate=True)

    # Parameters padded once, outside the hot path.
    params_f32, _ = prepare_mlp_block_params(w1, w2, gamma, beta)

    # 1) Exact erf-GELU + f32 matmuls: bit-faithful nn.GELU() path, tight check.
    out_exact = jax.block_until_ready(
        mlp_block_pallas(x, *params_f32, exact_gelu=True, mxu_bf16=False))
    assert out_exact.shape == (B, F)
    assert jnp.allclose(out_exact, ref_exact, atol=1e-5, rtol=1e-5), (
        f"exact path max abs err = {jnp.max(jnp.abs(out_exact - ref_exact))}")

    # 2) Default fast path: tanh-GELU (EUP) + one-pass LayerNorm, f32 matmuls.
    out_fast = jax.block_until_ready(mlp_block_pallas(x, *params_f32))
    assert jnp.allclose(out_fast, ref_tanh, atol=1e-5, rtol=1e-5), (
        f"tanh path max abs err vs tanh ref = {jnp.max(jnp.abs(out_fast - ref_tanh))}")
    assert jnp.allclose(out_fast, ref_exact, atol=5e-2), (
        f"tanh path max abs err vs exact ref = {jnp.max(jnp.abs(out_fast - ref_exact))}")

    # 3) bf16 storage path (operands fed to the MXU in bf16, f32 accumulation
    #    and f32 GELU / residual / LayerNorm epilogue inside the kernel).
    params_bf16, _ = prepare_mlp_block_params(
        w1.astype(jnp.bfloat16), w2.astype(jnp.bfloat16), gamma, beta)
    out_bf16 = jax.block_until_ready(
        mlp_block_pallas(x.astype(jnp.bfloat16), *params_bf16))
    assert out_bf16.shape == (B, F) and out_bf16.dtype == jnp.bfloat16
    assert jnp.allclose(out_bf16.astype(jnp.float32), ref_exact, atol=1e-1), (
        f"bf16 max abs err = {jnp.max(jnp.abs(out_bf16.astype(jnp.float32) - ref_exact))}")

    # 4) f32 storage with in-kernel bf16 matmul cast (mxu_bf16 accuracy flag).
    out_mxu = jax.block_until_ready(
        mlp_block_pallas(x, *params_f32, mxu_bf16=True))
    assert jnp.allclose(out_mxu, ref_exact, atol=1e-1), (
        f"mxu_bf16 max abs err = {jnp.max(jnp.abs(out_mxu - ref_exact))}")

    print("KERNEL_OK")
</pallas_src>

<mosaic_0001>
module attributes {stable_mosaic.version = 11 : i64} {
  func.func @mlp_block_kernel(%arg0: i32, %arg1: memref<128x128xf32, #tpu.memory_space<vmem>>, %arg2: memref<128x128xf32, #tpu.memory_space<vmem>>, %arg3: memref<128x128xf32, #tpu.memory_space<vmem>>, %arg4: memref<1x128xf32, #tpu.memory_space<vmem>>, %arg5: memref<1x128xf32, #tpu.memory_space<vmem>>, %arg6: memref<128x128xf32, #tpu.memory_space<vmem>>) attributes {dimension_semantics = [#tpu.dimension_semantics<parallel>], iteration_bounds = array<i64: 2>, scalar_prefetch = 0 : i64, scratch_operands = 0 : i64, tpu.core_type = #tpu.core_type<tc>, window_params = [{transform_indices = @transform_0, window_bounds = array<i64: 128, 128>}, {pipeline_mode = #tpu.pipeline_mode<synchronous>, transform_indices = @transform_1, window_bounds = array<i64: 128, 128>}, {pipeline_mode = #tpu.pipeline_mode<synchronous>, transform_indices = @transform_2, window_bounds = array<i64: 128, 128>}, {pipeline_mode = #tpu.pipeline_mode<synchronous>, transform_indices = @transform_3, window_bounds = array<i64: 1, 128>}, {pipeline_mode = #tpu.pipeline_mode<synchronous>, transform_indices = @transform_4, window_bounds = array<i64: 1, 128>}, {transform_indices = @transform_5, window_bounds = array<i64: 128, 128>}]} {
    %c0 = arith.constant 0 : index
    %c0_0 = arith.constant 0 : index
    %0 = vector.load %arg1[%c0, %c0_0] : memref<128x128xf32, #tpu.memory_space<vmem>>, vector<128x128xf32>
    %c0_1 = arith.constant 0 : index
    %c0_2 = arith.constant 0 : index
    %1 = vector.load %arg2[%c0_1, %c0_2] : memref<128x128xf32, #tpu.memory_space<vmem>>, vector<128x128xf32>
    %cst = arith.constant dense<0.000000e+00> : vector<128x128xf32>
    %2 = tpu.matmul %0, %1, %cst {dimension_numbers = #tpu.dot_dimension_numbers<[1], [0], [0], [1], [0, 0, 1, 1], [], []>} : vector<128x128xf32>, vector<128x128xf32>, vector<128x128xf32> -> vector<128x128xf32>
    %cst_3 = arith.constant 5.000000e-01 : f32
    %3 = vector.broadcast %cst_3 : f32 to vector<128x128xf32>
    %4 = arith.mulf %3, %2 : vector<128x128xf32>
    %cst_4 = arith.constant 0.707106769 : f32
    %5 = vector.broadcast %cst_4 : f32 to vector<128x128xf32>
    %6 = arith.mulf %2, %5 : vector<128x128xf32>
    %7 = math.erf %6 : vector<128x128xf32>
    %cst_5 = arith.constant 1.000000e+00 : f32
    %8 = vector.broadcast %cst_5 : f32 to vector<128x128xf32>
    %9 = arith.addf %8, %7 : vector<128x128xf32>
    %10 = arith.mulf %4, %9 : vector<128x128xf32>
    %c0_6 = arith.constant 0 : index
    %c0_7 = arith.constant 0 : index
    %11 = vector.load %arg3[%c0_6, %c0_7] : memref<128x128xf32, #tpu.memory_space<vmem>>, vector<128x128xf32>
    %cst_8 = arith.constant dense<0.000000e+00> : vector<128x128xf32>
    %12 = tpu.matmul %10, %11, %cst_8 {dimension_numbers = #tpu.dot_dimension_numbers<[1], [0], [0], [1], [0, 0, 1, 1], [], []>} : vector<128x128xf32>, vector<128x128xf32>, vector<128x128xf32> -> vector<128x128xf32>
    %13 = arith.addf %12, %0 : vector<128x128xf32>
    %cst_9 = arith.constant dense<0.000000e+00> : vector<128xf32>
    %14 = vector.multi_reduction <add>, %13, %cst_9 [1] : vector<128x128xf32> to vector<128xf32>
    %15 = vector.shape_cast %14 : vector<128xf32> to vector<128x1xf32>
    %16 = arith.mulf %13, %13 : vector<128x128xf32>
    %cst_10 = arith.constant dense<0.000000e+00> : vector<128xf32>
    %17 = vector.multi_reduction <add>, %16, %cst_10 [1] : vector<128x128xf32> to vector<128xf32>
    %18 = vector.shape_cast %17 : vector<128xf32> to vector<128x1xf32>
    %cst_11 = arith.constant 3.125000e-02 : f32
    %19 = vector.broadcast %cst_11 : f32 to vector<128x1xf32>
    %20 = arith.mulf %15, %19 : vector<128x1xf32>
    %cst_12 = arith.constant 3.125000e-02 : f32
    %21 = vector.broadcast %cst_12 : f32 to vector<128x1xf32>
    %22 = arith.mulf %18, %21 : vector<128x1xf32>
    %23 = arith.mulf %20, %20 : vector<128x1xf32>
    %24 = arith.subf %22, %23 : vector<128x1xf32>
    %25 = vector.broadcast %20 : vector<128x1xf32> to vector<128x128xf32>
    %26 = arith.subf %13, %25 : vector<128x128xf32>
    %cst_13 = arith.constant 9.99999974E-6 : f32
    %27 = vector.broadcast %cst_13 : f32 to vector<128x1xf32>
    %28 = arith.addf %24, %27 : vector<128x1xf32>
    %29 = math.rsqrt %28 : vector<128x1xf32>
    %30 = vector.broadcast %29 : vector<128x1xf32> to vector<128x128xf32>
    %31 = arith.mulf %26, %30 : vector<128x128xf32>
    %c0_14 = arith.constant 0 : index
    %c0_15 = arith.constant 0 : index
    %32 = vector.load %arg4[%c0_14, %c0_15] : memref<1x128xf32, #tpu.memory_space<vmem>>, vector<1x128xf32>
    %33 = vector.broadcast %32 : vector<1x128xf32> to vector<128x128xf32>
    %34 = arith.mulf %31, %33 : vector<128x128xf32>
    %c0_16 = arith.constant 0 : index
    %c0_17 = arith.constant 0 : index
    %35 = vector.load %arg5[%c0_16, %c0_17] : memref<1x128xf32, #tpu.memory_space<vmem>>, vector<1x128xf32>
    %36 = vector.broadcast %35 : vector<1x128xf32> to vector<128x128xf32>
    %37 = arith.addf %34, %36 : vector<128x128xf32>
    %c0_18 = arith.constant 0 : index
    %c0_19 = arith.constant 0 : index
    %38 = vector.load %arg6[%c0_18, %c0_19] : memref<128x128xf32, #tpu.memory_space<vmem>>, vector<128x128xf32>
    tpu.vector_store %arg6[%c0_18, %c0_19], %37 {strides = array<i32>} : memref<128x128xf32, #tpu.memory_space<vmem>>, vector<128x128xf32>,
    return
  }
  func.func @transform_0(%arg0: i32) -> (i32, i32) {
    %c0_i32 = arith.constant 0 : i32
    %c0_i32_0 = arith.constant 0 : i32
    return %arg0, %c0_i32 : i32, i32
  }
  func.func @transform_1(%arg0: i32) -> (i32, i32) {
    %c0_i32 = arith.constant 0 : i32
    %c0_i32_0 = arith.constant 0 : i32
    %c0_i32_1 = arith.constant 0 : i32
    return %c0_i32, %c0_i32_0 : i32, i32
  }
  func.func @transform_2(%arg0: i32) -> (i32, i32) {
    %c0_i32 = arith.constant 0 : i32
    %c0_i32_0 = arith.constant 0 : i32
    %c0_i32_1 = arith.constant 0 : i32
    return %c0_i32, %c0_i32_0 : i32, i32
  }
  func.func @transform_3(%arg0: i32) -> (i32, i32) {
    %c0_i32 = arith.constant 0 : i32
    %c0_i32_0 = arith.constant 0 : i32
    %c0_i32_1 = arith.constant 0 : i32
    return %c0_i32, %c0_i32_0 : i32, i32
  }
  func.func @transform_4(%arg0: i32) -> (i32, i32) {
    %c0_i32 = arith.constant 0 : i32
    %c0_i32_0 = arith.constant 0 : i32
    %c0_i32_1 = arith.constant 0 : i32
    return %c0_i32, %c0_i32_0 : i32, i32
  }
  func.func @transform_5(%arg0: i32) -> (i32, i32) {
    %c0_i32 = arith.constant 0 : i32
    %c0_i32_0 = arith.constant 0 : i32
    return %arg0, %c0_i32 : i32, i32
  }
}

</mosaic_0001>

<llo_original>
// kernel: mlp_block_pallas.1
$region0: #{mlp_block_pallas.1}
  #allocation0 [shape = 'u32[]', space=smem, size = 0x4, offset = 0x4, fixed_abs, tag = 'smem constant byte address 0x4 - core index']
  #allocation1 [shape = 'u32[72,128]{1,0:T(1,128)}', space=vmem, size = 0x9000, scoped, tag = 'internal scratch']
  %s0 = inlined_call_operand.vmem [shape: f32[256,128], index: 0, kind: input, shape index: {}]
  %s1 = inlined_call_operand.vmem [shape: f32[128,128], index: 1, kind: input, shape index: {}]
  %s2 = inlined_call_operand.vmem [shape: f32[128,128], index: 2, kind: input, shape index: {}]
  %s3 = inlined_call_operand.vmem [shape: f32[1,128], index: 3, kind: input, shape index: {}]
  %s4 = inlined_call_operand.vmem [shape: f32[1,128], index: 4, kind: input, shape index: {}]
  %s5 = inlined_call_operand.vmem [shape: f32[256,128], index: 5, kind: output, shape index: {}]
  %s6 = sld [smem:[#allocation0]]
  $region53: #{mlp_block_pallas.1} parent=0
    _
  %s8 = ssub.s32 1, %s6
  %s9 = scalar_select 0, %s8, %s6
  loop: start=0, step=1, limit=4
  $region2: #{mlp_block_pallas.1} parent=0 // loop_pre_header
    _
  $region3: #{mlp_block_pallas.1} parent=0 // loop_header
    %s11 = sphi 0, %s15
    %p12 = scmp.ge.s32.totalorder %s11, 4
    %s21 = sphi 0, %s23
    %s24 = sphi 0, %s21
    %s25 = sphi 0, %s24
    %s41 = sphi 0, %s25
    %s45 = sphi 0, %s45
    %s47 = sphi 0, %s45
    %s48 = sphi 0, %s47
    %s62 = sphi 0, %s48
    %s66 = sphi 0, %s66
    %s68 = sphi 0, %s66
    %s69 = sphi 0, %s68
    %s83 = sphi 0, %s69
    %s87 = sphi 0, %s87
    %s89 = sphi 0, %s87
    %s90 = sphi 0, %s89
    %s104 = sphi 0, %s90
    %s108 = sphi 0, %s108
    %s110 = sphi 0, %s108
    %s111 = sphi 0, %s110
    %s125 = sphi 0, %s111
    %s131 = sphi 0, %s133
    %s134 = sphi 0, %s131
    %s135 = sphi 0, %s134
    %s151 = sphi 0, %s135
  $region4: #{mlp_block_pallas.1} parent=0 // loop_header_branch
    %14 = sbr.rel (%p12) target = $region8
  $region5: #{mlp_block_pallas.1} parent=0 // loop_body
    %s16 = ssub.s32 %s11, 1
    %s17 = ssub.s32 %s11, 2
    %s18 = sadd.s32 %s11, 1
    %s19 = ssub.s32 %s11, %s18
    %p20 = scmp.eq.s32.totalorder %s19, 0
    %s22 = sadd.s32 %s21, 1
    %s23 = scalar_select %p20, %s21, %s22
    %p26 = pneg %p20
    %p27 = scmp.eq.s32.totalorder %s11, 1
    %p28 = por %p26, %p27
    %p29 = scmp.ne.s32.totalorder %s21, %s24
    %p30 = scmp.eq.s32.totalorder %s11, 0
    %p31 = por %p29, %p30
    %p32 = scmp.ne.s32.totalorder %s21, %s24
    %p33 = scmp.eq.s32.totalorder %s16, 1
    %p34 = por %p32, %p33
    %p35 = scmp.ne.s32.totalorder %s24, %s25
    %p36 = scmp.eq.s32.totalorder %s16, 0
    %p37 = por %p35, %p36
    %p38 = scmp.ne.s32.totalorder %s24, %s25
    %p39 = scmp.eq.s32.totalorder %s17, 1
    %p40 = por %p38, %p39
    %p42 = scmp.ne.s32.totalorder %s25, %s41
    %p43 = scmp.eq.s32.totalorder %s17, 0
    %p44 = por %p42, %p43
    %s46 = sadd.s32 %s45, 1
    %p49 = scmp.eq.s32.totalorder %s11, 1
    %p50 = scmp.ne.s32.totalorder %s45, %s47
    %p51 = scmp.eq.s32.totalorder %s11, 0
    %p52 = por %p50, %p51
    %p53 = scmp.ne.s32.totalorder %s45, %s47
    %p54 = scmp.eq.s32.totalorder %s16, 1
    %p55 = por %p53, %p54
    %p56 = scmp.ne.s32.totalorder %s47, %s48
    %p57 = scmp.eq.s32.totalorder %s16, 0
    %p58 = por %p56, %p57
    %p59 = scmp.ne.s32.totalorder %s47, %s48
    %p60 = scmp.eq.s32.totalorder %s17, 1
    %p61 = por %p59, %p60
    %p63 = scmp.ne.s32.totalorder %s48, %s62
    %p64 = scmp.eq.s32.totalorder %s17, 0
    %p65 = por %p63, %p64
    %s67 = sadd.s32 %s66, 1
    %p70 = scmp.eq.s32.totalorder %s11, 1
    %p71 = scmp.ne.s32.totalorder %s66, %s68
    %p72 = scmp.eq.s32.totalorder %s11, 0
    %p73 = por %p71, %p72
    %p74 = scmp.ne.s32.totalorder %s66, %s68
    %p75 = scmp.eq.s32.totalorder %s16, 1
    %p76 = por %p74, %p75
    %p77 = scmp.ne.s32.totalorder %s68, %s69
    %p78 = scmp.eq.s32.totalorder %s16, 0
    %p79 = por %p77, %p78
    %p80 = scmp.ne.s32.totalorder %s68, %s69
    %p81 = scmp.eq.s32.totalorder %s17, 1
    %p82 = por %p80, %p81
    %p84 = scmp.ne.s32.totalorder %s69, %s83
    %p85 = scmp.eq.s32.totalorder %s17, 0
    %p86 = por %p84, %p85
    %s88 = sadd.s32 %s87, 1
    %p91 = scmp.eq.s32.totalorder %s11, 1
    %p92 = scmp.ne.s32.totalorder %s87, %s89
    %p93 = scmp.eq.s32.totalorder %s11, 0
    %p94 = por %p92, %p93
    %p95 = scmp.ne.s32.totalorder %s87, %s89
    %p96 = scmp.eq.s32.totalorder %s16, 1
    %p97 = por %p95, %p96
    %p98 = scmp.ne.s32.totalorder %s89, %s90
    %p99 = scmp.eq.s32.totalorder %s16, 0
    %p100 = por %p98, %p99
    %p101 = scmp.ne.s32.totalorder %s89, %s90
    %p102 = scmp.eq.s32.totalorder %s17, 1
    %p103 = por %p101, %p102
    %p105 = scmp.ne.s32.totalorder %s90, %s104
    %p106 = scmp.eq.s32.totalorder %s17, 0
    %p107 = por %p105, %p106
    %s109 = sadd.s32 %s108, 1
    %p112 = scmp.eq.s32.totalorder %s11, 1
    %p113 = scmp.ne.s32.totalorder %s108, %s110
    %p114 = scmp.eq.s32.totalorder %s11, 0
    %p115 = por %p113, %p114
    %p116 = scmp.ne.s32.totalorder %s108, %s110
    %p117 = scmp.eq.s32.totalorder %s16, 1
    %p118 = por %p116, %p117
    %p119 = scmp.ne.s32.totalorder %s110, %s111
    %p120 = scmp.eq.s32.totalorder %s16, 0
    %p121 = por %p119, %p120
    %p122 = scmp.ne.s32.totalorder %s110, %s111
    %p123 = scmp.eq.s32.totalorder %s17, 1
    %p124 = por %p122, %p123
    %p126 = scmp.ne.s32.totalorder %s111, %s125
    %p127 = scmp.eq.s32.totalorder %s17, 0
    %p128 = por %p126, %p127
    %s129 = ssub.s32 %s11, %s18
    %p130 = scmp.eq.s32.totalorder %s129, 0
    %s132 = sadd.s32 %s131, 1
    %s133 = scalar_select %p130, %s131, %s132
    %p136 = pneg %p130
    %p137 = scmp.eq.s32.totalorder %s11, 1
    %p138 = por %p136, %p137
    %p139 = scmp.ne.s32.totalorder %s131, %s134
    %p140 = scmp.eq.s32.totalorder %s11, 0
    %p141 = por %p139, %p140
    %p142 = scmp.ne.s32.totalorder %s131, %s134
    %p143 = scmp.eq.s32.totalorder %s16, 1
    %p144 = por %p142, %p143
    %p145 = scmp.ne.s32.totalorder %s134, %s135
    %p146 = scmp.eq.s32.totalorder %s16, 0
    %p147 = por %p145, %p146
    %p148 = scmp.ne.s32.totalorder %s134, %s135
    %p149 = scmp.eq.s32.totalorder %s17, 1
    %p150 = por %p148, %p149
    %p152 = scmp.ne.s32.totalorder %s135, %s151
    %p153 = scmp.eq.s32.totalorder %s17, 0
    %p154 = por %p152, %p153
    %p155 = scmp.le.s32.totalorder 1, %s11
    %p156 = scmp.lt.s32.totalorder %s11, 3
    %p157 = pnand %p155, %p156
    %p158 = pneg %p157
    // Predicated region
    $region9: #{mlp_block_pallas.1} parent=5 // pred_check
      _
    $region10: #{mlp_block_pallas.1} parent=5 // pred_check_branch
      %160 = sbr.rel (%p157) target = $region12
    $region11: #{mlp_block_pallas.1} parent=5 // pred_region
      %s161 = ssub.s32 %s11, 1
      // Predicated region
      $region13: #{mlp_block_pallas.1} parent=11 // pred_check
        %p162 = pneg %p58
      $region14: #{mlp_block_pallas.1} parent=11 // pred_check_branch
        %164 = sbr.rel (%p162) target = $region16
      $region15: #{mlp_block_pallas.1} parent=11 // pred_region
        _
      $region16: #{mlp_block_pallas.1} parent=11 // pred_fallthru
        _
      // Predicated region
      $region17: #{mlp_block_pallas.1} parent=11 // pred_check
        %p165 = pneg %p79
      $region18: #{mlp_block_pallas.1} parent=11 // pred_check_branch
        %167 = sbr.rel (%p165) target = $region20
      $region19: #{mlp_block_pallas.1} parent=11 // pred_region
        _
      $region20: #{mlp_block_pallas.1} parent=11 // pred_fallthru
        _
      // Predicated region
      $region21: #{mlp_block_pallas.1} parent=11 // pred_check
        %p168 = pneg %p100
      $region22: #{mlp_block_pallas.1} parent=11 // pred_check_branch
        %170 = sbr.rel (%p168) target = $region24
      $region23: #{mlp_block_pallas.1} parent=11 // pred_region
        _
      $region24: #{mlp_block_pallas.1} parent=11 // pred_fallthru
        _
      // Predicated region
      $region25: #{mlp_block_pallas.1} parent=11 // pred_check
        %p171 = pneg %p121
      $region26: #{mlp_block_pallas.1} parent=11 // pred_check_branch
        %173 = sbr.rel (%p171) target = $region28
      $region27: #{mlp_block_pallas.1} parent=11 // pred_region
        _
      $region28: #{mlp_block_pallas.1} parent=11 // pred_fallthru
        _
    $region12: #{mlp_block_pallas.1} parent=5 // pred_fallthru
      _
    %p174 = scmp.lt.s32.totalorder %s11, 2
    // Predicated region
    $region29: #{mlp_block_pallas.1} parent=5 // pred_check
      %p175 = pneg %p174
    $region30: #{mlp_block_pallas.1} parent=5 // pred_check_branch
      %177 = sbr.rel (%p175) target = $region32
    $region31: #{mlp_block_pallas.1} parent=5 // pred_region
      // Predicated region
      $region33: #{mlp_block_pallas.1} parent=31 // pred_check
        %p178 = pneg %p31
      $region34: #{mlp_block_pallas.1} parent=31 // pred_check_branch
        %180 = sbr.rel (%p178) target = $region36
      $region35: #{mlp_block_pallas.1} parent=31 // pred_region
        %s181 = smul.u32 16, %s11
        %p182 = scmp.lt.s32.totalorder %s181, 31
        %s183 = scalar_select %p182, %s181, 31
        %s184 = smul.addr %s183, 8
        %s185 = scalar_lea.vmem %s0, %s184
        %s186 = smul.u32 16, %s11
      $region36: #{mlp_block_pallas.1} parent=31 // pred_fallthru
        _
    $region32: #{mlp_block_pallas.1} parent=5 // pred_fallthru
      _
    %p187 = scmp.le.s32.totalorder 1, %s11
    %p188 = scmp.lt.s32.totalorder %s11, 3
    %p189 = pnand %p187, %p188
    %p190 = pneg %p189
    // Predicated region
    $region37: #{mlp_block_pallas.1} parent=5 // pred_check
      _
    $region38: #{mlp_block_pallas.1} parent=5 // pred_check_branch
      %192 = sbr.rel (%p189) target = $region40
    $region39: #{mlp_block_pallas.1} parent=5 // pred_region
      %s193 = ssub.s32 %s11, 1
      %s194 = smul.u32 16, %s16
      %p195 = scmp.lt.s32.totalorder %s194, 31
      %s196 = scalar_select %p195, %s194, 31
      %s197 = smul.addr %s196, 8
      %s198 = scalar_lea.vmem %s0, %s197
      %p199 = pneg %p37
      %p200 = pneg %p34
      %p201 = pneg %p58
      %p202 = pneg %p55
      %p203 = pneg %p79
      %p204 = pneg %p76
      %p205 = pneg %p100
      %p206 = pneg %p97
      %p207 = pneg %p121
      %p208 = pneg %p118
      %p209 = pneg %p147
      %p210 = pneg %p144
      %s211 = smul.u32 16, %s16
      %p212 = scmp.lt.s32.totalorder %s211, 31
      %s213 = scalar_select %p212, %s211, 31
      %s214 = smul.addr %s213, 8
      %s215 = scalar_lea.vmem %s5, %s214
      %s216 = smul.u32 16, %s16
      %p217 = scmp.lt.s32.totalorder %s216, 31
      %s218 = scalar_select %p217, %s216, 31
      %s219 = smul.addr %s218, 8
      %s220 = scalar_lea.vmem %s0, %s219
      %s221 = smul.u32 16, %s16
      %s222 = smul.u32 16, %s16
      %p223 = scmp.lt.s32.totalorder %s222, 31
      %s224 = scalar_select %p223, %s222, 31
      %s225 = smul.addr %s224, 8
      %s226 = scalar_lea.vmem %s5, %s225
      %s227 = smul.u32 16, %s16
      %v228 = vld [vmem:[%s220] sm:$0xff]
      %v229 = vld [vmem:[%s220 + $0x8] sm:$0xff]
      %v230 = vld [vmem:[%s220 + $0x10] sm:$0xff]
      %v231 = vld [vmem:[%s220 + $0x18] sm:$0xff]
      %v232 = vld [vmem:[%s220 + $0x20] sm:$0xff]
      %v233 = vld [vmem:[%s220 + $0x28] sm:$0xff]
      %v234 = vld [vmem:[%s220 + $0x30] sm:$0xff]
      %v235 = vld [vmem:[%s220 + $0x38] sm:$0xff]
      %v236 = vld [vmem:[%s220 + $0x40] sm:$0xff]
      %v237 = vld [vmem:[%s220 + $0x48] sm:$0xff]
      %v238 = vld [vmem:[%s220 + $0x50] sm:$0xff]
      %v239 = vld [vmem:[%s220 + $0x58] sm:$0xff]
      %v240 = vld [vmem:[%s220 + $0x60] sm:$0xff]
      %v241 = vld [vmem:[%s220 + $0x68] sm:$0xff]
      %v242 = vld [vmem:[%s220 + $0x70] sm:$0xff]
      %v243 = vld [vmem:[%s220 + $0x78] sm:$0xff]
      %v244 = vld [vmem:[%s1] sm:$0xff]
      %v245 = vld [vmem:[%s1 + $0x8] sm:$0xff]
      %v246 = vld [vmem:[%s1 + $0x10] sm:$0xff]
      %v247 = vld [vmem:[%s1 + $0x18] sm:$0xff]
      %v248 = vld [vmem:[%s1 + $0x20] sm:$0xff]
      %v249 = vld [vmem:[%s1 + $0x28] sm:$0xff]
      %v250 = vld [vmem:[%s1 + $0x30] sm:$0xff]
      %v251 = vld [vmem:[%s1 + $0x38] sm:$0xff]
      %v252 = vld [vmem:[%s1 + $0x40] sm:$0xff]
      %v253 = vld [vmem:[%s1 + $0x48] sm:$0xff]
      %v254 = vld [vmem:[%s1 + $0x50] sm:$0xff]
      %v255 = vld [vmem:[%s1 + $0x58] sm:$0xff]
      %v256 = vld [vmem:[%s1 + $0x60] sm:$0xff]
      %v257 = vld [vmem:[%s1 + $0x68] sm:$0xff]
      %v258 = vld [vmem:[%s1 + $0x70] sm:$0xff]
      %v259 = vld [vmem:[%s1 + $0x78] sm:$0xff]
      %260 = vmatpush.msra.mxu0 %v259
      %261 = vmatpush.msra.mxu0 %v258
      %262 = vmatpush.msra.mxu0 %v257
      %263 = vmatpush.msra.mxu0 %v256
      %264 = vmatpush.msra.mxu0 %v255
      %265 = vmatpush.msra.mxu0 %v254
      %266 = vmatpush.msra.mxu0 %v253
      %267 = vmatpush.msra.mxu0 %v252
      %268 = vmatpush.msra.mxu0 %v251
      %269 = vmatpush.msra.mxu0 %v250
      %270 = vmatpush.msra.mxu0 %v249
      %271 = vmatpush.msra.mxu0 %v248
      %272 = vmatpush.msra.mxu0 %v247
      %273 = vmatpush.msra.mxu0 %v246
      %274 = vmatpush.msra.mxu0 %v245
      %275 = vmatpush.msra.mxu0 %v244
      %276 = vmatmul.f32.gmra.mxu0 %v228
      %v277 = vpop.f32.mrf.mxu0
      %v278 = vadd.f32 0.0, %v277
      %279 = vmatmul.f32.gmra.mxu0 %v229
      %v280 = vpop.f32.mrf.mxu0
      %v281 = vadd.f32 0.0, %v280
      %282 = vmatmul.f32.gmra.mxu0 %v230
      %v283 = vpop.f32.mrf.mxu0
      %v284 = vadd.f32 0.0, %v283
      %285 = vmatmul.f32.gmra.mxu0 %v231
      %v286 = vpop.f32.mrf.mxu0
      %v287 = vadd.f32 0.0, %v286
      %288 = vmatmul.f32.gmra.mxu0 %v232
      %v289 = vpop.f32.mrf.mxu0
      %v290 = vadd.f32 0.0, %v289
      %291 = vmatmul.f32.gmra.mxu0 %v233
      %v292 = vpop.f32.mrf.mxu0
      %v293 = vadd.f32 0.0, %v292
      %294 = vmatmul.f32.gmra.mxu0 %v234
      %v295 = vpop.f32.mrf.mxu0
      %v296 = vadd.f32 0.0, %v295
      %297 = vmatmul.f32.gmra.mxu0 %v235
      %v298 = vpop.f32.mrf.mxu0
      %v299 = vadd.f32 0.0, %v298
      %300 = vmatmul.f32.gmra.mxu0 %v236
      %v301 = vpop.f32.mrf.mxu0
      %v302 = vadd.f32 0.0, %v301
      %303 = vmatmul.f32.gmra.mxu0 %v237
      %v304 = vpop.f32.mrf.mxu0
      %v305 = vadd.f32 0.0, %v304
      %306 = vmatmul.f32.gmra.mxu0 %v238
      %v307 = vpop.f32.mrf.mxu0
      %v308 = vadd.f32 0.0, %v307
      %309 = vmatmul.f32.gmra.mxu0 %v239
      %v310 = vpop.f32.mrf.mxu0
      %v311 = vadd.f32 0.0, %v310
      %312 = vmatmul.f32.gmra.mxu0 %v240
      %v313 = vpop.f32.mrf.mxu0
      %v314 = vadd.f32 0.0, %v313
      %315 = vmatmul.f32.gmra.mxu0 %v241
      %v316 = vpop.f32.mrf.mxu0
      %v317 = vadd.f32 0.0, %v316
      %318 = vmatmul.f32.gmra.mxu0 %v242
      %v319 = vpop.f32.mrf.mxu0
      %v320 = vadd.f32 0.0, %v319
      %321 = vmatmul.f32.gmra.mxu0 %v243
      %v322 = vpop.f32.mrf.mxu0
      %v323 = vadd.f32 0.0, %v322
      %324 = vdwg.mxu0
      %v325 = vmul.f32 %v278, 0.5
      %v326 = vmul.f32 %v281, 0.5
      %v327 = vmul.f32 %v284, 0.5
      %v328 = vmul.f32 %v287, 0.5
      %v329 = vmul.f32 %v290, 0.5
      %v330 = vmul.f32 %v293, 0.5
      %v331 = vmul.f32 %v296, 0.5
      %v332 = vmul.f32 %v299, 0.5
      %v333 = vmul.f32 %v302, 0.5
      %v334 = vmul.f32 %v305, 0.5
      %v335 = vmul.f32 %v308, 0.5
      %v336 = vmul.f32 %v311, 0.5
      %v337 = vmul.f32 %v314, 0.5
      %v338 = vmul.f32 %v317, 0.5
      %v339 = vmul.f32 %v320, 0.5
      %v340 = vmul.f32 %v323, 0.5
      %v341 = vmul.f32 %v278, 0.70710677
      %v342 = vmul.f32 %v281, 0.70710677
      %v343 = vmul.f32 %v284, 0.70710677
      %v344 = vmul.f32 %v287, 0.70710677
      %v345 = vmul.f32 %v290, 0.70710677
      %v346 = vmul.f32 %v293, 0.70710677
      %v347 = vmul.f32 %v296, 0.70710677
      %v348 = vmul.f32 %v299, 0.70710677
      %v349 = vmul.f32 %v302, 0.70710677
      %v350 = vmul.f32 %v305, 0.70710677
      %v351 = vmul.f32 %v308, 0.70710677
      %v352 = vmul.f32 %v311, 0.70710677
      %v353 = vmul.f32 %v314, 0.70710677
      %v354 = vmul.f32 %v317, 0.70710677
      %v355 = vmul.f32 %v320, 0.70710677
      %v356 = vmul.f32 %v323, 0.70710677
      %v357 = vmul.f32 %v341, %v341
      %v358 = vmin.f32 16.0, %v357
      %v359 = vmul.f32 %v358, 2.1237322e-06
      %v360 = vadd.f32 %v359, 0.00028619796
      %v361 = vmul.f32 %v358, %v360
      %v362 = vadd.f32 %v361, 0.0036580483
      %v363 = vmul.f32 %v358, %v362
      %v364 = vadd.f32 %v363, 0.05243302
      %v365 = vmul.f32 %v358, %v364
      %v366 = vadd.f32 %v365, 0.18741608
      %v367 = vmul.f32 %v358, %v366
      %v368 = vadd.f32 %v367, 1.1283791
      %v369 = vmul.f32 %v341, %v368
      %v370 = vmul.f32 %v358, 3.8918573e-05
      %v371 = vadd.f32 %v370, 0.001143296
      %v372 = vmul.f32 %v358, %v371
      %v373 = vadd.f32 %v372, 0.014752088
      %v374 = vmul.f32 %v358, %v373
      %v375 = vadd.f32 %v374, 0.112945676
      %v376 = vmul.f32 %v358, %v375
      %v377 = vadd.f32 %v376, 0.4994258
      %v378 = vmul.f32 %v358, %v377
      %v379 = vadd.f32 %v378, 1.0
      %v380 = vrcp.pop %v379
      %v381 = vmul.f32 %v379, %v380
      %v382 = vsub.f32 1.0, %v381
      %v383 = vmul.f32 %v380, %v382
      %v384 = vadd.f32 %v380, %v383
      %vm385 = vweird.f32 %v379
      %vm386 = vweird.f32 %v380
      %vm387 = vmor %vm385, %vm386
      %v388 = vsel %vm387, %v380, %v384
      %v389 = vand.u32 2147483647, %v379
      %vm390 = vcmp.eq.f32.partialorder %v389, 8.507059e+37
      %v391 = vand.u32 %v379, 2147483648
      %v392 = vor.u32 1.1754944e-38, %v391
      %v393 = vsel %vm390, %v392, %v388
      %v394 = vmul.f32 %v369, %v393
      %v395 = vmin.f32 %v394, 1.0
      %v396 = vmax.f32 %v395, -1.0
      %v397 = vmul.f32 %v342, %v342
      %v398 = vmin.f32 16.0, %v397
      %v399 = vmul.f32 %v398, 2.1237322e-06
      %v400 = vadd.f32 %v399, 0.00028619796
      %v401 = vmul.f32 %v398, %v400
      %v402 = vadd.f32 %v401, 0.0036580483
      %v403 = vmul.f32 %v398, %v402
      %v404 = vadd.f32 %v403, 0.05243302
      %v405 = vmul.f32 %v398, %v404
      %v406 = vadd.f32 %v405, 0.18741608
      %v407 = vmul.f32 %v398, %v406
      %v408 = vadd.f32 %v407, 1.1283791
      %v409 = vmul.f32 %v342, %v408
      %v410 = vmul.f32 %v398, 3.8918573e-05
      %v411 = vadd.f32 %v410, 0.001143296
      %v412 = vmul.f32 %v398, %v411
      %v413 = vadd.f32 %v412, 0.014752088
      %v414 = vmul.f32 %v398, %v413
      %v415 = vadd.f32 %v414, 0.112945676
      %v416 = vmul.f32 %v398, %v415
      %v417 = vadd.f32 %v416, 0.4994258
      %v418 = vmul.f32 %v398, %v417
      %v419 = vadd.f32 %v418, 1.0
      %v420 = vrcp.pop %v419
      %v421 = vmul.f32 %v419, %v420
      %v422 = vsub.f32 1.0, %v421
      %v423 = vmul.f32 %v420, %v422
      %v424 = vadd.f32 %v420, %v423
      %vm425 = vweird.f32 %v419
      %vm426 = vweird.f32 %v420
      %vm427 = vmor %vm425, %vm426
      %v428 = vsel %vm427, %v420, %v424
      %v429 = vand.u32 2147483647, %v419
      %vm430 = vcmp.eq.f32.partialorder %v429, 8.507059e+37
      %v431 = vand.u32 %v419, 2147483648
      %v432 = vor.u32 1.1754944e-38, %v431
      %v433 = vsel %vm430, %v432, %v428
      %v434 = vmul.f32 %v409, %v433
      %v435 = vmin.f32 %v434, 1.0
      %v436 = vmax.f32 %v435, -1.0
      %v437 = vmul.f32 %v343, %v343
      %v438 = vmin.f32 16.0, %v437
      %v439 = vmul.f32 %v438, 2.1237322e-06
      %v440 = vadd.f32 %v439, 0.00028619796
      %v441 = vmul.f32 %v438, %v440
      %v442 = vadd.f32 %v441, 0.0036580483
      %v443 = vmul.f32 %v438, %v442
      %v444 = vadd.f32 %v443, 0.05243302
      %v445 = vmul.f32 %v438, %v444
      %v446 = vadd.f32 %v445, 0.18741608
      %v447 = vmul.f32 %v438, %v446
      %v448 = vadd.f32 %v447, 1.1283791
      %v449 = vmul.f32 %v343, %v448
      %v450 = vmul.f32 %v438, 3.8918573e-05
      %v451 = vadd.f32 %v450, 0.001143296
      %v452 = vmul.f32 %v438, %v451
      %v453 = vadd.f32 %v452, 0.014752088
      %v454 = vmul.f32 %v438, %v453
      %v455 = vadd.f32 %v454, 0.112945676
      %v456 = vmul.f32 %v438, %v455
      %v457 = vadd.f32 %v456, 0.4994258
      %v458 = vmul.f32 %v438, %v457
      %v459 = vadd.f32 %v458, 1.0
      %v460 = vrcp.pop %v459
      %v461 = vmul.f32 %v459, %v460
      %v462 = vsub.f32 1.0, %v461
      %v463 = vmul.f32 %v460, %v462
      %v464 = vadd.f32 %v460, %v463
      %vm465 = vweird.f32 %v459
      %vm466 = vweird.f32 %v460
      %vm467 = vmor %vm465, %vm466
      %v468 = vsel %vm467, %v460, %v464
      %v469 = vand.u32 2147483647, %v459
      %vm470 = vcmp.eq.f32.partialorder %v469, 8.507059e+37
      %v471 = vand.u32 %v459, 2147483648
      %v472 = vor.u32 1.1754944e-38, %v471
      %v473 = vsel %vm470, %v472, %v468
      %v474 = vmul.f32 %v449, %v473
      %v475 = vmin.f32 %v474, 1.0
      %v476 = vmax.f32 %v475, -1.0
      %v477 = vmul.f32 %v344, %v344
      %v478 = vmin.f32 16.0, %v477
      %v479 = vmul.f32 %v478, 2.1237322e-06
      %v480 = vadd.f32 %v479, 0.00028619796
      %v481 = vmul.f32 %v478, %v480
      %v482 = vadd.f32 %v481, 0.0036580483
      %v483 = vmul.f32 %v478, %v482
      %v484 = vadd.f32 %v483, 0.05243302
      %v485 = vmul.f32 %v478, %v484
      %v486 = vadd.f32 %v485, 0.18741608
      %v487 = vmul.f32 %v478, %v486
      %v488 = vadd.f32 %v487, 1.1283791
      %v489 = vmul.f32 %v344, %v488
      %v490 = vmul.f32 %v478, 3.8918573e-05
      %v491 = vadd.f32 %v490, 0.001143296
      %v492 = vmul.f32 %v478, %v491
      %v493 = vadd.f32 %v492, 0.014752088
      %v494 = vmul.f32 %v478, %v493
      %v495 = vadd.f32 %v494, 0.112945676
      %v496 = vmul.f32 %v478, %v495
      %v497 = vadd.f32 %v496, 0.4994258
      %v498 = vmul.f32 %v478, %v497
      %v499 = vadd.f32 %v498, 1.0
      %v500 = vrcp.pop %v499
      %v501 = vmul.f32 %v499, %v500
      %v502 = vsub.f32 1.0, %v501
      %v503 = vmul.f32 %v500, %v502
      %v504 = vadd.f32 %v500, %v503
      %vm505 = vweird.f32 %v499
      %vm506 = vweird.f32 %v500
      %vm507 = vmor %vm505, %vm506
      %v508 = vsel %vm507, %v500, %v504
      %v509 = vand.u32 2147483647, %v499
      %vm510 = vcmp.eq.f32.partialorder %v509, 8.507059e+37
      %v511 = vand.u32 %v499, 2147483648
      %v512 = vor.u32 1.1754944e-38, %v511
      %v513 = vsel %vm510, %v512, %v508
      %v514 = vmul.f32 %v489, %v513
      %v515 = vmin.f32 %v514, 1.0
      %v516 = vmax.f32 %v515, -1.0
      %v517 = vmul.f32 %v345, %v345
      %v518 = vmin.f32 16.0, %v517
      %v519 = vmul.f32 %v518, 2.1237322e-06
      %v520 = vadd.f32 %v519, 0.00028619796
      %v521 = vmul.f32 %v518, %v520
      %v522 = vadd.f32 %v521, 0.0036580483
      %v523 = vmul.f32 %v518, %v522
      %v524 = vadd.f32 %v523, 0.05243302
      %v525 = vmul.f32 %v518, %v524
      %v526 = vadd.f32 %v525, 0.18741608
      %v527 = vmul.f32 %v518, %v526
      %v528 = vadd.f32 %v527, 1.1283791
      %v529 = vmul.f32 %v345, %v528
      %v530 = vmul.f32 %v518, 3.8918573e-05
      %v531 = vadd.f32 %v530, 0.001143296
      %v532 = vmul.f32 %v518, %v531
      %v533 = vadd.f32 %v532, 0.014752088
      %v534 = vmul.f32 %v518, %v533
      %v535 = vadd.f32 %v534, 0.112945676
      %v536 = vmul.f32 %v518, %v535
      %v537 = vadd.f32 %v536, 0.4994258
      %v538 = vmul.f32 %v518, %v537
      %v539 = vadd.f32 %v538, 1.0
      %v540 = vrcp.pop %v539
      %v541 = vmul.f32 %v539, %v540
      %v542 = vsub.f32 1.0, %v541
      %v543 = vmul.f32 %v540, %v542
      %v544 = vadd.f32 %v540, %v543
      %vm545 = vweird.f32 %v539
      %vm546 = vweird.f32 %v540
      %vm547 = vmor %vm545, %vm546
      %v548 = vsel %vm547, %v540, %v544
      %v549 = vand.u32 2147483647, %v539
      %vm550 = vcmp.eq.f32.partialorder %v549, 8.507059e+37
      %v551 = vand.u32 %v539, 2147483648
      %v552 = vor.u32 1.1754944e-38, %v551
      %v553 = vsel %vm550, %v552, %v548
      %v554 = vmul.f32 %v529, %v553
      %v555 = vmin.f32 %v554, 1.0
      %v556 = vmax.f32 %v555, -1.0
      %v557 = vmul.f32 %v346, %v346
      %v558 = vmin.f32 16.0, %v557
      %v559 = vmul.f32 %v558, 2.1237322e-06
      %v560 = vadd.f32 %v559, 0.00028619796
      %v561 = vmul.f32 %v558, %v560
      %v562 = vadd.f32 %v561, 0.0036580483
      %v563 = vmul.f32 %v558, %v562
      %v564 = vadd.f32 %v563, 0.05243302
      %v565 = vmul.f32 %v558, %v564
      %v566 = vadd.f32 %v565, 0.18741608
      %v567 = vmul.f32 %v558, %v566
      %v568 = vadd.f32 %v567, 1.1283791
      %v569 = vmul.f32 %v346, %v568
      %v570 = vmul.f32 %v558, 3.8918573e-05
      %v571 = vadd.f32 %v570, 0.001143296
      %v572 = vmul.f32 %v558, %v571
      %v573 = vadd.f32 %v572, 0.014752088
      %v574 = vmul.f32 %v558, %v573
      %v575 = vadd.f32 %v574, 0.112945676
      %v576 = vmul.f32 %v558, %v575
      %v577 = vadd.f32 %v576, 0.4994258
      %v578 = vmul.f32 %v558, %v577
      %v579 = vadd.f32 %v578, 1.0
      %v580 = vrcp.pop %v579
      %v581 = vmul.f32 %v579, %v580
      %v582 = vsub.f32 1.0, %v581
      %v583 = vmul.f32 %v580, %v582
      %v584 = vadd.f32 %v580, %v583
      %vm585 = vweird.f32 %v579
      %vm586 = vweird.f32 %v580
      %vm587 = vmor %vm585, %vm586
      %v588 = vsel %vm587, %v580, %v584
      %v589 = vand.u32 2147483647, %v579
      %vm590 = vcmp.eq.f32.partialorder %v589, 8.507059e+37
      %v591 = vand.u32 %v579, 2147483648
      %v592 = vor.u32 1.1754944e-38, %v591
      %v593 = vsel %vm590, %v592, %v588
      %v594 = vmul.f32 %v569, %v593
      %v595 = vmin.f32 %v594, 1.0
      %v596 = vmax.f32 %v595, -1.0
      %v597 = vmul.f32 %v347, %v347
      %v598 = vmin.f32 16.0, %v597
      %v599 = vmul.f32 %v598, 2.1237322e-06
      %v600 = vadd.f32 %v599, 0.00028619796
      %v601 = vmul.f32 %v598, %v600
      %v602 = vadd.f32 %v601, 0.0036580483
      %v603 = vmul.f32 %v598, %v602
      %v604 = vadd.f32 %v603, 0.05243302
      %v605 = vmul.f32 %v598, %v604
      %v606 = vadd.f32 %v605, 0.18741608
      %v607 = vmul.f32 %v598, %v606
      %v608 = vadd.f32 %v607, 1.1283791
      %v609 = vmul.f32 %v347, %v608
      %v610 = vmul.f32 %v598, 3.8918573e-05
      %v611 = vadd.f32 %v610, 0.001143296
      %v612 = vmul.f32 %v598, %v611
      %v613 = vadd.f32 %v612, 0.014752088
      %v614 = vmul.f32 %v598, %v613
      %v615 = vadd.f32 %v614, 0.112945676
      %v616 = vmul.f32 %v598, %v615
      %v617 = vadd.f32 %v616, 0.4994258
      %v618 = vmul.f32 %v598, %v617
      %v619 = vadd.f32 %v618, 1.0
      %v620 = vrcp.pop %v619
      %v621 = vmul.f32 %v619, %v620
      %v622 = vsub.f32 1.0, %v621
      %v623 = vmul.f32 %v620, %v622
      %v624 = vadd.f32 %v620, %v623
      %vm625 = vweird.f32 %v619
      %vm626 = vweird.f32 %v620
      %vm627 = vmor %vm625, %vm626
      %v628 = vsel %vm627, %v620, %v624
      %v629 = vand.u32 2147483647, %v619
      %vm630 = vcmp.eq.f32.partialorder %v629, 8.507059e+37
      %v631 = vand.u32 %v619, 2147483648
      %v632 = vor.u32 1.1754944e-38, %v631
      %v633 = vsel %vm630, %v632, %v628
      %v634 = vmul.f32 %v609, %v633
      %v635 = vmin.f32 %v634, 1.0
      %v636 = vmax.f32 %v635, -1.0
      %v637 = vmul.f32 %v348, %v348
      %v638 = vmin.f32 16.0, %v637
      %v639 = vmul.f32 %v638, 2.1237322e-06
      %v640 = vadd.f32 %v639, 0.00028619796
      %v641 = vmul.f32 %v638, %v640
      %v642 = vadd.f32 %v641, 0.0036580483
      %v643 = vmul.f32 %v638, %v642
      %v644 = vadd.f32 %v643, 0.05243302
      %v645 = vmul.f32 %v638, %v644
      %v646 = vadd.f32 %v645, 0.18741608
      %v647 = vmul.f32 %v638, %v646
      %v648 = vadd.f32 %v647, 1.1283791
      %v649 = vmul.f32 %v348, %v648
      %v650 = vmul.f32 %v638, 3.8918573e-05
      %v651 = vadd.f32 %v650, 0.001143296
      %v652 = vmul.f32 %v638, %v651
      %v653 = vadd.f32 %v652, 0.014752088
      %v654 = vmul.f32 %v638, %v653
      %v655 = vadd.f32 %v654, 0.112945676
      %v656 = vmul.f32 %v638, %v655
      %v657 = vadd.f32 %v656, 0.4994258
      %v658 = vmul.f32 %v638, %v657
      %v659 = vadd.f32 %v658, 1.0
      %v660 = vrcp.pop %v659
      %v661 = vmul.f32 %v659, %v660
      %v662 = vsub.f32 1.0, %v661
      %v663 = vmul.f32 %v660, %v662
      %v664 = vadd.f32 %v660, %v663
      %vm665 = vweird.f32 %v659
      %vm666 = vweird.f32 %v660
      %vm667 = vmor %vm665, %vm666
      %v668 = vsel %vm667, %v660, %v664
      %v669 = vand.u32 2147483647, %v659
      %vm670 = vcmp.eq.f32.partialorder %v669, 8.507059e+37
      %v671 = vand.u32 %v659, 2147483648
      %v672 = vor.u32 1.1754944e-38, %v671
      %v673 = vsel %vm670, %v672, %v668
      %v674 = vmul.f32 %v649, %v673
      %v675 = vmin.f32 %v674, 1.0
      %v676 = vmax.f32 %v675, -1.0
      %v677 = vmul.f32 %v349, %v349
      %v678 = vmin.f32 16.0, %v677
      %v679 = vmul.f32 %v678, 2.1237322e-06
      %v680 = vadd.f32 %v679, 0.00028619796
      %v681 = vmul.f32 %v678, %v680
      %v682 = vadd.f32 %v681, 0.0036580483
      %v683 = vmul.f32 %v678, %v682
      %v684 = vadd.f32 %v683, 0.05243302
      %v685 = vmul.f32 %v678, %v684
      %v686 = vadd.f32 %v685, 0.18741608
      %v687 = vmul.f32 %v678, %v686
      %v688 = vadd.f32 %v687, 1.1283791
      %v689 = vmul.f32 %v349, %v688
      %v690 = vmul.f32 %v678, 3.8918573e-05
      %v691 = vadd.f32 %v690, 0.001143296
      %v692 = vmul.f32 %v678, %v691
      %v693 = vadd.f32 %v692, 0.014752088
      %v694 = vmul.f32 %v678, %v693
      %v695 = vadd.f32 %v694, 0.112945676
      %v696 = vmul.f32 %v678, %v695
      %v697 = vadd.f32 %v696, 0.4994258
      %v698 = vmul.f32 %v678, %v697
      %v699 = vadd.f32 %v698, 1.0
      %v700 = vrcp.pop %v699
      %v701 = vmul.f32 %v699, %v700
      %v702 = vsub.f32 1.0, %v701
      %v703 = vmul.f32 %v700, %v702
      %v704 = vadd.f32 %v700, %v703
      %vm705 = vweird.f32 %v699
      %vm706 = vweird.f32 %v700
      %vm707 = vmor %vm705, %vm706
      %v708 = vsel %vm707, %v700, %v704
      %v709 = vand.u32 2147483647, %v699
      %vm710 = vcmp.eq.f32.partialorder %v709, 8.507059e+37
      %v711 = vand.u32 %v699, 2147483648
      %v712 = vor.u32 1.1754944e-38, %v711
      %v713 = vsel %vm710, %v712, %v708
      %v714 = vmul.f32 %v689, %v713
      %v715 = vmin.f32 %v714, 1.0
      %v716 = vmax.f32 %v715, -1.0
      %v717 = vmul.f32 %v350, %v350
      %v718 = vmin.f32 16.0, %v717
      %v719 = vmul.f32 %v718, 2.1237322e-06
      %v720 = vadd.f32 %v719, 0.00028619796
      %v721 = vmul.f32 %v718, %v720
      %v722 = vadd.f32 %v721, 0.0036580483
      %v723 = vmul.f32 %v718, %v722
      %v724 = vadd.f32 %v723, 0.05243302
      %v725 = vmul.f32 %v718, %v724
      %v726 = vadd.f32 %v725, 0.18741608
      %v727 = vmul.f32 %v718, %v726
      %v728 = vadd.f32 %v727, 1.1283791
      %v729 = vmul.f32 %v350, %v728
      %v730 = vmul.f32 %v718, 3.8918573e-05
      %v731 = vadd.f32 %v730, 0.001143296
      %v732 = vmul.f32 %v718, %v731
      %v733 = vadd.f32 %v732, 0.014752088
      %v734 = vmul.f32 %v718, %v733
      %v735 = vadd.f32 %v734, 0.112945676
      %v736 = vmul.f32 %v718, %v735
      %v737 = vadd.f32 %v736, 0.4994258
      %v738 = vmul.f32 %v718, %v737
      %v739 = vadd.f32 %v738, 1.0
      %v740 = vrcp.pop %v739
      %v741 = vmul.f32 %v739, %v740
      %v742 = vsub.f32 1.0, %v741
      %v743 = vmul.f32 %v740, %v742
      %v744 = vadd.f32 %v740, %v743
      %vm745 = vweird.f32 %v739
      %vm746 = vweird.f32 %v740
      %vm747 = vmor %vm745, %vm746
      %v748 = vsel %vm747, %v740, %v744
      %v749 = vand.u32 2147483647, %v739
      %vm750 = vcmp.eq.f32.partialorder %v749, 8.507059e+37
      %v751 = vand.u32 %v739, 2147483648
      %v752 = vor.u32 1.1754944e-38, %v751
      %v753 = vsel %vm750, %v752, %v748
      %v754 = vmul.f32 %v729, %v753
      %v755 = vmin.f32 %v754, 1.0
      %v756 = vmax.f32 %v755, -1.0
      %v757 = vmul.f32 %v351, %v351
      %v758 = vmin.f32 16.0, %v757
      %v759 = vmul.f32 %v758, 2.1237322e-06
      %v760 = vadd.f32 %v759, 0.00028619796
      %v761 = vmul.f32 %v758, %v760
      %v762 = vadd.f32 %v761, 0.0036580483
      %v763 = vmul.f32 %v758, %v762
      %v764 = vadd.f32 %v763, 0.05243302
      %v765 = vmul.f32 %v758, %v764
      %v766 = vadd.f32 %v765, 0.18741608
      %v767 = vmul.f32 %v758, %v766
      %v768 = vadd.f32 %v767, 1.1283791
      %v769 = vmul.f32 %v351, %v768
      %v770 = vmul.f32 %v758, 3.8918573e-05
      %v771 = vadd.f32 %v770, 0.001143296
      %v772 = vmul.f32 %v758, %v771
      %v773 = vadd.f32 %v772, 0.014752088
      %v774 = vmul.f32 %v758, %v773
      %v775 = vadd.f32 %v774, 0.112945676
      %v776 = vmul.f32 %v758, %v775
      %v777 = vadd.f32 %v776, 0.4994258
      %v778 = vmul.f32 %v758, %v777
      %v779 = vadd.f32 %v778, 1.0
      %v780 = vrcp.pop %v779
      %v781 = vmul.f32 %v779, %v780
      %v782 = vsub.f32 1.0, %v781
      %v783 = vmul.f32 %v780, %v782
      %v784 = vadd.f32 %v780, %v783
      %vm785 = vweird.f32 %v779
      %vm786 = vweird.f32 %v780
      %vm787 = vmor %vm785, %vm786
      %v788 = vsel %vm787, %v780, %v784
      %v789 = vand.u32 2147483647, %v779
      %vm790 = vcmp.eq.f32.partialorder %v789, 8.507059e+37
      %v791 = vand.u32 %v779, 2147483648
      %v792 = vor.u32 1.1754944e-38, %v791
      %v793 = vsel %vm790, %v792, %v788
      %v794 = vmul.f32 %v769, %v793
      %v795 = vmin.f32 %v794, 1.0
      %v796 = vmax.f32 %v795, -1.0
      %v797 = vmul.f32 %v352, %v352
      %v798 = vmin.f32 16.0, %v797
      %v799 = vmul.f32 %v798, 2.1237322e-06
      %v800 = vadd.f32 %v799, 0.00028619796
      %v801 = vmul.f32 %v798, %v800
      %v802 = vadd.f32 %v801, 0.0036580483
      %v803 = vmul.f32 %v798, %v802
      %v804 = vadd.f32 %v803, 0.05243302
      %v805 = vmul.f32 %v798, %v804
      %v806 = vadd.f32 %v805, 0.18741608
      %v807 = vmul.f32 %v798, %v806
      %v808 = vadd.f32 %v807, 1.1283791
      %v809 = vmul.f32 %v352, %v808
      %v810 = vmul.f32 %v798, 3.8918573e-05
      %v811 = vadd.f32 %v810, 0.001143296
      %v812 = vmul.f32 %v798, %v811
      %v813 = vadd.f32 %v812, 0.014752088
      %v814 = vmul.f32 %v798, %v813
      %v815 = vadd.f32 %v814, 0.112945676
      %v816 = vmul.f32 %v798, %v815
      %v817 = vadd.f32 %v816, 0.4994258
      %v818 = vmul.f32 %v798, %v817
      %v819 = vadd.f32 %v818, 1.0
      %v820 = vrcp.pop %v819
      %v821 = vmul.f32 %v819, %v820
      %v822 = vsub.f32 1.0, %v821
      %v823 = vmul.f32 %v820, %v822
      %v824 = vadd.f32 %v820, %v823
      %vm825 = vweird.f32 %v819
      %vm826 = vweird.f32 %v820
      %vm827 = vmor %vm825, %vm826
      %v828 = vsel %vm827, %v820, %v824
      %v829 = vand.u32 2147483647, %v819
      %vm830 = vcmp.eq.f32.partialorder %v829, 8.507059e+37
      %v831 = vand.u32 %v819, 2147483648
      %v832 = vor.u32 1.1754944e-38, %v831
      %v833 = vsel %vm830, %v832, %v828
      %v834 = vmul.f32 %v809, %v833
      %v835 = vmin.f32 %v834, 1.0
      %v836 = vmax.f32 %v835, -1.0
      %v837 = vmul.f32 %v353, %v353
      %v838 = vmin.f32 16.0, %v837
      %v839 = vmul.f32 %v838, 2.1237322e-06
      %v840 = vadd.f32 %v839, 0.00028619796
      %v841 = vmul.f32 %v838, %v840
      %v842 = vadd.f32 %v841, 0.0036580483
      %v843 = vmul.f32 %v838, %v842
      %v844 = vadd.f32 %v843, 0.05243302
      %v845 = vmul.f32 %v838, %v844
      %v846 = vadd.f32 %v845, 0.18741608
      %v847 = vmul.f32 %v838, %v846
      %v848 = vadd.f32 %v847, 1.1283791
      %v849 = vmul.f32 %v353, %v848
      %v850 = vmul.f32 %v838, 3.8918573e-05
      %v851 = vadd.f32 %v850, 0.001143296
      %v852 = vmul.f32 %v838, %v851
      %v853 = vadd.f32 %v852, 0.014752088
      %v854 = vmul.f32 %v838, %v853
      %v855 = vadd.f32 %v854, 0.112945676
      %v856 = vmul.f32 %v838, %v855
      %v857 = vadd.f32 %v856, 0.4994258
      %v858 = vmul.f32 %v838, %v857
      %v859 = vadd.f32 %v858, 1.0
      %v860 = vrcp.pop %v859
      %v861 = vmul.f32 %v859, %v860
      %v862 = vsub.f32 1.0, %v861
      %v863 = vmul.f32 %v860, %v862
      %v864 = vadd.f32 %v860, %v863
      %vm865 = vweird.f32 %v859
      %vm866 = vweird.f32 %v860
      %vm867 = vmor %vm865, %vm866
      %v868 = vsel %vm867, %v860, %v864
      %v869 = vand.u32 2147483647, %v859
      %vm870 = vcmp.eq.f32.partialorder %v869, 8.507059e+37
      %v871 = vand.u32 %v859, 2147483648
      %v872 = vor.u32 1.1754944e-38, %v871
      %v873 = vsel %vm870, %v872, %v868
      %v874 = vmul.f32 %v849, %v873
      %v875 = vmin.f32 %v874, 1.0
      %v876 = vmax.f32 %v875, -1.0
      %v877 = vmul.f32 %v354, %v354
      %v878 = vmin.f32 16.0, %v877
      %v879 = vmul.f32 %v878, 2.1237322e-06
      %v880 = vadd.f32 %v879, 0.00028619796
      %v881 = vmul.f32 %v878, %v880
      %v882 = vadd.f32 %v881, 0.0036580483
      %v883 = vmul.f32 %v878, %v882
      %v884 = vadd.f32 %v883, 0.05243302
      %v885 = vmul.f32 %v878, %v884
      %v886 = vadd.f32 %v885, 0.18741608
      %v887 = vmul.f32 %v878, %v886
      %v888 = vadd.f32 %v887, 1.1283791
      %v889 = vmul.f32 %v354, %v888
      %v890 = vmul.f32 %v878, 3.8918573e-05
      %v891 = vadd.f32 %v890, 0.001143296
      %v892 = vmul.f32 %v878, %v891
      %v893 = vadd.f32 %v892, 0.014752088
      %v894 = vmul.f32 %v878, %v893
      %v895 = vadd.f32 %v894, 0.112945676
      %v896 = vmul.f32 %v878, %v895
      %v897 = vadd.f32 %v896, 0.4994258
      %v898 = vmul.f32 %v878, %v897
      %v899 = vadd.f32 %v898, 1.0
      %v900 = vrcp.pop %v899
      %v901 = vmul.f32 %v899, %v900
      %v902 = vsub.f32 1.0, %v901
      %v903 = vmul.f32 %v900, %v902
      %v904 = vadd.f32 %v900, %v903
      %vm905 = vweird.f32 %v899
      %vm906 = vweird.f32 %v900
      %vm907 = vmor %vm905, %vm906
      %v908 = vsel %vm907, %v900, %v904
      %v909 = vand.u32 2147483647, %v899
      %vm910 = vcmp.eq.f32.partialorder %v909, 8.507059e+37
      %v911 = vand.u32 %v899, 2147483648
      %v912 = vor.u32 1.1754944e-38, %v911
      %v913 = vsel %vm910, %v912, %v908
      %v914 = vmul.f32 %v889, %v913
      %v915 = vmin.f32 %v914, 1.0
      %v916 = vmax.f32 %v915, -1.0
      %v917 = vmul.f32 %v355, %v355
      %v918 = vmin.f32 16.0, %v917
      %v919 = vmul.f32 %v918, 2.1237322e-06
      %v920 = vadd.f32 %v919, 0.00028619796
      %v921 = vmul.f32 %v918, %v920
      %v922 = vadd.f32 %v921, 0.0036580483
      %v923 = vmul.f32 %v918, %v922
      %v924 = vadd.f32 %v923, 0.05243302
      %v925 = vmul.f32 %v918, %v924
      %v926 = vadd.f32 %v925, 0.18741608
      %v927 = vmul.f32 %v918, %v926
      %v928 = vadd.f32 %v927, 1.1283791
      %v929 = vmul.f32 %v355, %v928
      %v930 = vmul.f32 %v918, 3.8918573e-05
      %v931 = vadd.f32 %v930, 0.001143296
      %v932 = vmul.f32 %v918, %v931
      %v933 = vadd.f32 %v932, 0.014752088
      %v934 = vmul.f32 %v918, %v933
      %v935 = vadd.f32 %v934, 0.112945676
      %v936 = vmul.f32 %v918, %v935
      %v937 = vadd.f32 %v936, 0.4994258
      %v938 = vmul.f32 %v918, %v937
      %v939 = vadd.f32 %v938, 1.0
      %v940 = vrcp.pop %v939
      %v941 = vmul.f32 %v939, %v940
      %v942 = vsub.f32 1.0, %v941
      %v943 = vmul.f32 %v940, %v942
      %v944 = vadd.f32 %v940, %v943
      %vm945 = vweird.f32 %v939
      %vm946 = vweird.f32 %v940
      %vm947 = vmor %vm945, %vm946
      %v948 = vsel %vm947, %v940, %v944
      %v949 = vand.u32 2147483647, %v939
      %vm950 = vcmp.eq.f32.partialorder %v949, 8.507059e+37
      %v951 = vand.u32 %v939, 2147483648
      %v952 = vor.u32 1.1754944e-38, %v951
      %v953 = vsel %vm950, %v952, %v948
      %v954 = vmul.f32 %v929, %v953
      %v955 = vmin.f32 %v954, 1.0
      %v956 = vmax.f32 %v955, -1.0
      %v957 = vmul.f32 %v356, %v356
      %v958 = vmin.f32 16.0, %v957
      %v959 = vmul.f32 %v958, 2.1237322e-06
      %v960 = vadd.f32 %v959, 0.00028619796
      %v961 = vmul.f32 %v958, %v960
      %v962 = vadd.f32 %v961, 0.0036580483
      %v963 = vmul.f32 %v958, %v962
      %v964 = vadd.f32 %v963, 0.05243302
      %v965 = vmul.f32 %v958, %v964
      %v966 = vadd.f32 %v965, 0.18741608
      %v967 = vmul.f32 %v958, %v966
      %v968 = vadd.f32 %v967, 1.1283791
      %v969 = vmul.f32 %v356, %v968
      %v970 = vmul.f32 %v958, 3.8918573e-05
      %v971 = vadd.f32 %v970, 0.001143296
      %v972 = vmul.f32 %v958, %v971
      %v973 = vadd.f32 %v972, 0.014752088
      %v974 = vmul.f32 %v958, %v973
      %v975 = vadd.f32 %v974, 0.112945676
      %v976 = vmul.f32 %v958, %v975
      %v977 = vadd.f32 %v976, 0.4994258
      %v978 = vmul.f32 %v958, %v977
      %v979 = vadd.f32 %v978, 1.0
      %v980 = vrcp.pop %v979
      %v981 = vmul.f32 %v979, %v980
      %v982 = vsub.f32 1.0, %v981
      %v983 = vmul.f32 %v980, %v982
      %v984 = vadd.f32 %v980, %v983
      %vm985 = vweird.f32 %v979
      %vm986 = vweird.f32 %v980
      %vm987 = vmor %vm985, %vm986
      %v988 = vsel %vm987, %v980, %v984
      %v989 = vand.u32 2147483647, %v979
      %vm990 = vcmp.eq.f32.partialorder %v989, 8.507059e+37
      %v991 = vand.u32 %v979, 2147483648
      %v992 = vor.u32 1.1754944e-38, %v991
      %v993 = vsel %vm990, %v992, %v988
      %v994 = vmul.f32 %v969, %v993
      %v995 = vmin.f32 %v994, 1.0
      %v996 = vmax.f32 %v995, -1.0
      %v997 = vadd.f32 %v396, 1.0
      %v998 = vadd.f32 %v436, 1.0
      %v999 = vadd.f32 %v476, 1.0
      %v1000 = vadd.f32 %v516, 1.0
      %v1001 = vadd.f32 %v556, 1.0
      %v1002 = vadd.f32 %v596, 1.0
      %v1003 = vadd.f32 %v636, 1.0
      %v1004 = vadd.f32 %v676, 1.0
      %v1005 = vadd.f32 %v716, 1.0
      %v1006 = vadd.f32 %v756, 1.0
      %v1007 = vadd.f32 %v796, 1.0
      %v1008 = vadd.f32 %v836, 1.0
      %v1009 = vadd.f32 %v876, 1.0
      %v1010 = vadd.f32 %v916, 1.0
      %v1011 = vadd.f32 %v956, 1.0
      %v1012 = vadd.f32 %v996, 1.0
      %v1013 = vmul.f32 %v325, %v997
      %v1014 = vmul.f32 %v326, %v998
      %v1015 = vmul.f32 %v327, %v999
      %v1016 = vmul.f32 %v328, %v1000
      %v1017 = vmul.f32 %v329, %v1001
      %v1018 = vmul.f32 %v330, %v1002
      %v1019 = vmul.f32 %v331, %v1003
      %v1020 = vmul.f32 %v332, %v1004
      %v1021 = vmul.f32 %v333, %v1005
      %v1022 = vmul.f32 %v334, %v1006
      %v1023 = vmul.f32 %v335, %v1007
      %v1024 = vmul.f32 %v336, %v1008
      %v1025 = vmul.f32 %v337, %v1009
      %v1026 = vmul.f32 %v338, %v1010
      %v1027 = vmul.f32 %v339, %v1011
      %v1028 = vmul.f32 %v340, %v1012
      %v1029 = vld [vmem:[%s2] sm:$0xff]
      %v1030 = vld [vmem:[%s2 + $0x8] sm:$0xff]
      %v1031 = vld [vmem:[%s2 + $0x10] sm:$0xff]
      %v1032 = vld [vmem:[%s2 + $0x18] sm:$0xff]
      %v1033 = vld [vmem:[%s2 + $0x20] sm:$0xff]
      %v1034 = vld [vmem:[%s2 + $0x28] sm:$0xff]
      %v1035 = vld [vmem:[%s2 + $0x30] sm:$0xff]
      %v1036 = vld [vmem:[%s2 + $0x38] sm:$0xff]
      %v1037 = vld [vmem:[%s2 + $0x40] sm:$0xff]
      %v1038 = vld [vmem:[%s2 + $0x48] sm:$0xff]
      %v1039 = vld [vmem:[%s2 + $0x50] sm:$0xff]
      %v1040 = vld [vmem:[%s2 + $0x58] sm:$0xff]
      %v1041 = vld [vmem:[%s2 + $0x60] sm:$0xff]
      %v1042 = vld [vmem:[%s2 + $0x68] sm:$0xff]
      %v1043 = vld [vmem:[%s2 + $0x70] sm:$0xff]
      %v1044 = vld [vmem:[%s2 + $0x78] sm:$0xff]
      %1045 = vmatpush.msra.mxu0 %v1044
      %1046 = vmatpush.msra.mxu0 %v1043
      %1047 = vmatpush.msra.mxu0 %v1042
      %1048 = vmatpush.msra.mxu0 %v1041
      %1049 = vmatpush.msra.mxu0 %v1040
      %1050 = vmatpush.msra.mxu0 %v1039
      %1051 = vmatpush.msra.mxu0 %v1038
      %1052 = vmatpush.msra.mxu0 %v1037
      %1053 = vmatpush.msra.mxu0 %v1036
      %1054 = vmatpush.msra.mxu0 %v1035
      %1055 = vmatpush.msra.mxu0 %v1034
      %1056 = vmatpush.msra.mxu0 %v1033
      %1057 = vmatpush.msra.mxu0 %v1032
      %1058 = vmatpush.msra.mxu0 %v1031
      %1059 = vmatpush.msra.mxu0 %v1030
      %1060 = vmatpush.msra.mxu0 %v1029
      %1061 = vmatmul.f32.gmra.mxu0 %v1013
      %v1062 = vpop.f32.mrf.mxu0
      %v1063 = vadd.f32 %v228, %v1062
      %1064 = vmatmul.f32.gmra.mxu0 %v1014
      %v1065 = vpop.f32.mrf.mxu0
      %v1066 = vadd.f32 %v229, %v1065
      %1067 = vmatmul.f32.gmra.mxu0 %v1015
      %v1068 = vpop.f32.mrf.mxu0
      %v1069 = vadd.f32 %v230, %v1068
      %1070 = vmatmul.f32.gmra.mxu0 %v1016
      %v1071 = vpop.f32.mrf.mxu0
      %v1072 = vadd.f32 %v231, %v1071
      %1073 = vmatmul.f32.gmra.mxu0 %v1017
      %v1074 = vpop.f32.mrf.mxu0
      %v1075 = vadd.f32 %v232, %v1074
      %1076 = vmatmul.f32.gmra.mxu0 %v1018
      %v1077 = vpop.f32.mrf.mxu0
      %v1078 = vadd.f32 %v233, %v1077
      %1079 = vmatmul.f32.gmra.mxu0 %v1019
      %v1080 = vpop.f32.mrf.mxu0
      %v1081 = vadd.f32 %v234, %v1080
      %1082 = vmatmul.f32.gmra.mxu0 %v1020
      %v1083 = vpop.f32.mrf.mxu0
      %v1084 = vadd.f32 %v235, %v1083
      %1085 = vmatmul.f32.gmra.mxu0 %v1021
      %v1086 = vpop.f32.mrf.mxu0
      %v1087 = vadd.f32 %v236, %v1086
      %1088 = vmatmul.f32.gmra.mxu0 %v1022
      %v1089 = vpop.f32.mrf.mxu0
      %v1090 = vadd.f32 %v237, %v1089
      %1091 = vmatmul.f32.gmra.mxu0 %v1023
      %v1092 = vpop.f32.mrf.mxu0
      %v1093 = vadd.f32 %v238, %v1092
      %1094 = vmatmul.f32.gmra.mxu0 %v1024
      %v1095 = vpop.f32.mrf.mxu0
      %v1096 = vadd.f32 %v239, %v1095
      %1097 = vmatmul.f32.gmra.mxu0 %v1025
      %v1098 = vpop.f32.mrf.mxu0
      %v1099 = vadd.f32 %v240, %v1098
      %1100 = vmatmul.f32.gmra.mxu0 %v1026
      %v1101 = vpop.f32.mrf.mxu0
      %v1102 = vadd.f32 %v241, %v1101
      %1103 = vmatmul.f32.gmra.mxu0 %v1027
      %v1104 = vpop.f32.mrf.mxu0
      %v1105 = vadd.f32 %v242, %v1104
      %1106 = vmatmul.f32.gmra.mxu0 %v1028
      %v1107 = vpop.f32.mrf.mxu0
      %v1108 = vadd.f32 %v243, %v1107
      %1109 = vdwg.mxu0
      %1110 = vadd.xlane.f32.xlu0 %v1063
      %v1111 = vpop.xlane.xlu0 %1110
      %1112 = vadd.xlane.f32.xlu0 %v1066
      %v1113 = vpop.xlane.xlu0 %1112
      %1114 = vadd.xlane.f32.xlu0 %v1069
      %v1115 = vpop.xlane.xlu0 %1114
      %1116 = vadd.xlane.f32.xlu0 %v1072
      %v1117 = vpop.xlane.xlu0 %1116
      %1118 = vadd.xlane.f32.xlu0 %v1075
      %v1119 = vpop.xlane.xlu0 %1118
      %1120 = vadd.xlane.f32.xlu0 %v1078
      %v1121 = vpop.xlane.xlu0 %1120
      %1122 = vadd.xlane.f32.xlu0 %v1081
      %v1123 = vpop.xlane.xlu0 %1122
      %1124 = vadd.xlane.f32.xlu0 %v1084
      %v1125 = vpop.xlane.xlu0 %1124
      %1126 = vadd.xlane.f32.xlu0 %v1087
      %v1127 = vpop.xlane.xlu0 %1126
      %1128 = vadd.xlane.f32.xlu0 %v1090
      %v1129 = vpop.xlane.xlu0 %1128
      %1130 = vadd.xlane.f32.xlu0 %v1093
      %v1131 = vpop.xlane.xlu0 %1130
      %1132 = vadd.xlane.f32.xlu0 %v1096
      %v1133 = vpop.xlane.xlu0 %1132
      %1134 = vadd.xlane.f32.xlu0 %v1099
      %v1135 = vpop.xlane.xlu0 %1134
      %1136 = vadd.xlane.f32.xlu0 %v1102
      %v1137 = vpop.xlane.xlu0 %1136
      %1138 = vadd.xlane.f32.xlu0 %v1105
      %v1139 = vpop.xlane.xlu0 %1138
      %1140 = vadd.xlane.f32.xlu0 %v1108
      %v1141 = vpop.xlane.xlu0 %1140
      %v1142 = vmul.f32 %v1063, %v1063
      %v1143 = vmul.f32 %v1066, %v1066
      %v1144 = vmul.f32 %v1069, %v1069
      %v1145 = vmul.f32 %v1072, %v1072
      %v1146 = vmul.f32 %v1075, %v1075
      %v1147 = vmul.f32 %v1078, %v1078
      %v1148 = vmul.f32 %v1081, %v1081
      %v1149 = vmul.f32 %v1084, %v1084
      %v1150 = vmul.f32 %v1087, %v1087
      %v1151 = vmul.f32 %v1090, %v1090
      %v1152 = vmul.f32 %v1093, %v1093
      %v1153 = vmul.f32 %v1096, %v1096
      %v1154 = vmul.f32 %v1099, %v1099
      %v1155 = vmul.f32 %v1102, %v1102
      %v1156 = vmul.f32 %v1105, %v1105
      %v1157 = vmul.f32 %v1108, %v1108
      %1158 = vadd.xlane.f32.xlu0 %v1142
      %v1159 = vpop.xlane.xlu0 %1158
      %1160 = vadd.xlane.f32.xlu0 %v1143
      %v1161 = vpop.xlane.xlu0 %1160
      %1162 = vadd.xlane.f32.xlu0 %v1144
      %v1163 = vpop.xlane.xlu0 %1162
      %1164 = vadd.xlane.f32.xlu0 %v1145
      %v1165 = vpop.xlane.xlu0 %1164
      %1166 = vadd.xlane.f32.xlu0 %v1146
      %v1167 = vpop.xlane.xlu0 %1166
      %1168 = vadd.xlane.f32.xlu0 %v1147
      %v1169 = vpop.xlane.xlu0 %1168
      %1170 = vadd.xlane.f32.xlu0 %v1148
      %v1171 = vpop.xlane.xlu0 %1170
      %1172 = vadd.xlane.f32.xlu0 %v1149
      %v1173 = vpop.xlane.xlu0 %1172
      %1174 = vadd.xlane.f32.xlu0 %v1150
      %v1175 = vpop.xlane.xlu0 %1174
      %1176 = vadd.xlane.f32.xlu0 %v1151
      %v1177 = vpop.xlane.xlu0 %1176
      %1178 = vadd.xlane.f32.xlu0 %v1152
      %v1179 = vpop.xlane.xlu0 %1178
      %1180 = vadd.xlane.f32.xlu0 %v1153
      %v1181 = vpop.xlane.xlu0 %1180
      %1182 = vadd.xlane.f32.xlu0 %v1154
      %v1183 = vpop.xlane.xlu0 %1182
      %1184 = vadd.xlane.f32.xlu0 %v1155
      %v1185 = vpop.xlane.xlu0 %1184
      %1186 = vadd.xlane.f32.xlu0 %v1156
      %v1187 = vpop.xlane.xlu0 %1186
      %1188 = vadd.xlane.f32.xlu0 %v1157
      %v1189 = vpop.xlane.xlu0 %1188
      %v1190 = vmul.f32 %v1111, 0.03125
      %v1191 = vmul.f32 %v1113, 0.03125
      %v1192 = vmul.f32 %v1115, 0.03125
      %v1193 = vmul.f32 %v1117, 0.03125
      %v1194 = vmul.f32 %v1119, 0.03125
      %v1195 = vmul.f32 %v1121, 0.03125
      %v1196 = vmul.f32 %v1123, 0.03125
      %v1197 = vmul.f32 %v1125, 0.03125
      %v1198 = vmul.f32 %v1127, 0.03125
      %v1199 = vmul.f32 %v1129, 0.03125
      %v1200 = vmul.f32 %v1131, 0.03125
      %v1201 = vmul.f32 %v1133, 0.03125
      %v1202 = vmul.f32 %v1135, 0.03125
      %v1203 = vmul.f32 %v1137, 0.03125
      %v1204 = vmul.f32 %v1139, 0.03125
      %v1205 = vmul.f32 %v1141, 0.03125
      %v1206 = vmul.f32 %v1159, 0.03125
      %v1207 = vmul.f32 %v1161, 0.03125
      %v1208 = vmul.f32 %v1163, 0.03125
      %v1209 = vmul.f32 %v1165, 0.03125
      %v1210 = vmul.f32 %v1167, 0.03125
      %v1211 = vmul.f32 %v1169, 0.03125
      %v1212 = vmul.f32 %v1171, 0.03125
      %v1213 = vmul.f32 %v1173, 0.03125
      %v1214 = vmul.f32 %v1175, 0.03125
      %v1215 = vmul.f32 %v1177, 0.03125
      %v1216 = vmul.f32 %v1179, 0.03125
      %v1217 = vmul.f32 %v1181, 0.03125
      %v1218 = vmul.f32 %v1183, 0.03125
      %v1219 = vmul.f32 %v1185, 0.03125
      %v1220 = vmul.f32 %v1187, 0.03125
      %v1221 = vmul.f32 %v1189, 0.03125
      %v1222 = vmul.f32 %v1190, %v1190
      %v1223 = vmul.f32 %v1191, %v1191
      %v1224 = vmul.f32 %v1192, %v1192
      %v1225 = vmul.f32 %v1193, %v1193
      %v1226 = vmul.f32 %v1194, %v1194
      %v1227 = vmul.f32 %v1195, %v1195
      %v1228 = vmul.f32 %v1196, %v1196
      %v1229 = vmul.f32 %v1197, %v1197
      %v1230 = vmul.f32 %v1198, %v1198
      %v1231 = vmul.f32 %v1199, %v1199
      %v1232 = vmul.f32 %v1200, %v1200
      %v1233 = vmul.f32 %v1201, %v1201
      %v1234 = vmul.f32 %v1202, %v1202
      %v1235 = vmul.f32 %v1203, %v1203
      %v1236 = vmul.f32 %v1204, %v1204
      %v1237 = vmul.f32 %v1205, %v1205
      %v1238 = vsub.f32 %v1206, %v1222
      %v1239 = vsub.f32 %v1207, %v1223
      %v1240 = vsub.f32 %v1208, %v1224
      %v1241 = vsub.f32 %v1209, %v1225
      %v1242 = vsub.f32 %v1210, %v1226
      %v1243 = vsub.f32 %v1211, %v1227
      %v1244 = vsub.f32 %v1212, %v1228
      %v1245 = vsub.f32 %v1213, %v1229
      %v1246 = vsub.f32 %v1214, %v1230
      %v1247 = vsub.f32 %v1215, %v1231
      %v1248 = vsub.f32 %v1216, %v1232
      %v1249 = vsub.f32 %v1217, %v1233
      %v1250 = vsub.f32 %v1218, %v1234
      %v1251 = vsub.f32 %v1219, %v1235
      %v1252 = vsub.f32 %v1220, %v1236
      %v1253 = vsub.f32 %v1221, %v1237
      %v1254 = vsub.f32 %v1063, %v1190
      %v1255 = vsub.f32 %v1066, %v1191
      %v1256 = vsub.f32 %v1069, %v1192
      %v1257 = vsub.f32 %v1072, %v1193
      %v1258 = vsub.f32 %v1075, %v1194
      %v1259 = vsub.f32 %v1078, %v1195
      %v1260 = vsub.f32 %v1081, %v1196
      %v1261 = vsub.f32 %v1084, %v1197
      %v1262 = vsub.f32 %v1087, %v1198
      %v1263 = vsub.f32 %v1090, %v1199
      %v1264 = vsub.f32 %v1093, %v1200
      %v1265 = vsub.f32 %v1096, %v1201
      %v1266 = vsub.f32 %v1099, %v1202
      %v1267 = vsub.f32 %v1102, %v1203
      %v1268 = vsub.f32 %v1105, %v1204
      %v1269 = vsub.f32 %v1108, %v1205
      %v1270 = vadd.f32 %v1238, 1e-05
      %v1271 = vadd.f32 %v1239, 1e-05
      %v1272 = vadd.f32 %v1240, 1e-05
      %v1273 = vadd.f32 %v1241, 1e-05
      %v1274 = vadd.f32 %v1242, 1e-05
      %v1275 = vadd.f32 %v1243, 1e-05
      %v1276 = vadd.f32 %v1244, 1e-05
      %v1277 = vadd.f32 %v1245, 1e-05
      %v1278 = vadd.f32 %v1246, 1e-05
      %v1279 = vadd.f32 %v1247, 1e-05
      %v1280 = vadd.f32 %v1248, 1e-05
      %v1281 = vadd.f32 %v1249, 1e-05
      %v1282 = vadd.f32 %v1250, 1e-05
      %v1283 = vadd.f32 %v1251, 1e-05
      %v1284 = vadd.f32 %v1252, 1e-05
      %v1285 = vadd.f32 %v1253, 1e-05
      %v1286 = vrsqrt.pop %v1270
      %v1287 = vmul.f32 %v1286, %v1270
      %v1288 = vmul.f32 %v1287, %v1286
      %v1289 = vmul.f32 0.5, %v1288
      %v1290 = vsub.f32 1.5, %v1289
      %v1291 = vmul.f32 %v1286, %v1290
      %vm1292 = vweird.f32 %v1270
      %vm1293 = vweird.f32 %v1286
      %vm1294 = vmor %vm1292, %vm1293
      %v1295 = vsel %vm1294, %v1286, %v1291
      %v1296 = vrsqrt.pop %v1271
      %v1297 = vmul.f32 %v1296, %v1271
      %v1298 = vmul.f32 %v1297, %v1296
      %v1299 = vmul.f32 0.5, %v1298
      %v1300 = vsub.f32 1.5, %v1299
      %v1301 = vmul.f32 %v1296, %v1300
      %vm1302 = vweird.f32 %v1271
      %vm1303 = vweird.f32 %v1296
      %vm1304 = vmor %vm1302, %vm1303
      %v1305 = vsel %vm1304, %v1296, %v1301
      %v1306 = vrsqrt.pop %v1272
      %v1307 = vmul.f32 %v1306, %v1272
      %v1308 = vmul.f32 %v1307, %v1306
      %v1309 = vmul.f32 0.5, %v1308
      %v1310 = vsub.f32 1.5, %v1309
      %v1311 = vmul.f32 %v1306, %v1310
      %vm1312 = vweird.f32 %v1272
      %vm1313 = vweird.f32 %v1306
      %vm1314 = vmor %vm1312, %vm1313
      %v1315 = vsel %vm1314, %v1306, %v1311
      %v1316 = vrsqrt.pop %v1273
      %v1317 = vmul.f32 %v1316, %v1273
      %v1318 = vmul.f32 %v1317, %v1316
      %v1319 = vmul.f32 0.5, %v1318
      %v1320 = vsub.f32 1.5, %v1319
      %v1321 = vmul.f32 %v1316, %v1320
      %vm1322 = vweird.f32 %v1273
      %vm1323 = vweird.f32 %v1316
      %vm1324 = vmor %vm1322, %vm1323
      %v1325 = vsel %vm1324, %v1316, %v1321
      %v1326 = vrsqrt.pop %v1274
      %v1327 = vmul.f32 %v1326, %v1274
      %v1328 = vmul.f32 %v1327, %v1326
      %v1329 = vmul.f32 0.5, %v1328
      %v1330 = vsub.f32 1.5, %v1329
      %v1331 = vmul.f32 %v1326, %v1330
      %vm1332 = vweird.f32 %v1274
      %vm1333 = vweird.f32 %v1326
      %vm1334 = vmor %vm1332, %vm1333
      %v1335 = vsel %vm1334, %v1326, %v1331
      %v1336 = vrsqrt.pop %v1275
      %v1337 = vmul.f32 %v1336, %v1275
      %v1338 = vmul.f32 %v1337, %v1336
      %v1339 = vmul.f32 0.5, %v1338
      %v1340 = vsub.f32 1.5, %v1339
      %v1341 = vmul.f32 %v1336, %v1340
      %vm1342 = vweird.f32 %v1275
      %vm1343 = vweird.f32 %v1336
      %vm1344 = vmor %vm1342, %vm1343
      %v1345 = vsel %vm1344, %v1336, %v1341
      %v1346 = vrsqrt.pop %v1276
      %v1347 = vmul.f32 %v1346, %v1276
      %v1348 = vmul.f32 %v1347, %v1346
      %v1349 = vmul.f32 0.5, %v1348
      %v1350 = vsub.f32 1.5, %v1349
      %v1351 = vmul.f32 %v1346, %v1350
      %vm1352 = vweird.f32 %v1276
      %vm1353 = vweird.f32 %v1346
      %vm1354 = vmor %vm1352, %vm1353
      %v1355 = vsel %vm1354, %v1346, %v1351
      %v1356 = vrsqrt.pop %v1277
      %v1357 = vmul.f32 %v1356, %v1277
      %v1358 = vmul.f32 %v1357, %v1356
      %v1359 = vmul.f32 0.5, %v1358
      %v1360 = vsub.f32 1.5, %v1359
      %v1361 = vmul.f32 %v1356, %v1360
      %vm1362 = vweird.f32 %v1277
      %vm1363 = vweird.f32 %v1356
      %vm1364 = vmor %vm1362, %vm1363
      %v1365 = vsel %vm1364, %v1356, %v1361
      %v1366 = vrsqrt.pop %v1278
      %v1367 = vmul.f32 %v1366, %v1278
      %v1368 = vmul.f32 %v1367, %v1366
      %v1369 = vmul.f32 0.5, %v1368
      %v1370 = vsub.f32 1.5, %v1369
      %v1371 = vmul.f32 %v1366, %v1370
      %vm1372 = vweird.f32 %v1278
      %vm1373 = vweird.f32 %v1366
      %vm1374 = vmor %vm1372, %vm1373
      %v1375 = vsel %vm1374, %v1366, %v1371
      %v1376 = vrsqrt.pop %v1279
      %v1377 = vmul.f32 %v1376, %v1279
      %v1378 = vmul.f32 %v1377, %v1376
      %v1379 = vmul.f32 0.5, %v1378
      %v1380 = vsub.f32 1.5, %v1379
      %v1381 = vmul.f32 %v1376, %v1380
      %vm1382 = vweird.f32 %v1279
      %vm1383 = vweird.f32 %v1376
      %vm1384 = vmor %vm1382, %vm1383
      %v1385 = vsel %vm1384, %v1376, %v1381
      %v1386 = vrsqrt.pop %v1280
      %v1387 = vmul.f32 %v1386, %v1280
      %v1388 = vmul.f32 %v1387, %v1386
      %v1389 = vmul.f32 0.5, %v1388
      %v1390 = vsub.f32 1.5, %v1389
      %v1391 = vmul.f32 %v1386, %v1390
      %vm1392 = vweird.f32 %v1280
      %vm1393 = vweird.f32 %v1386
      %vm1394 = vmor %vm1392, %vm1393
      %v1395 = vsel %vm1394, %v1386, %v1391
      %v1396 = vrsqrt.pop %v1281
      %v1397 = vmul.f32 %v1396, %v1281
      %v1398 = vmul.f32 %v1397, %v1396
      %v1399 = vmul.f32 0.5, %v1398
      %v1400 = vsub.f32 1.5, %v1399
      %v1401 = vmul.f32 %v1396, %v1400
      %vm1402 = vweird.f32 %v1281
      %vm1403 = vweird.f32 %v1396
      %vm1404 = vmor %vm1402, %vm1403
      %v1405 = vsel %vm1404, %v1396, %v1401
      %v1406 = vrsqrt.pop %v1282
      %v1407 = vmul.f32 %v1406, %v1282
      %v1408 = vmul.f32 %v1407, %v1406
      %v1409 = vmul.f32 0.5, %v1408
      %v1410 = vsub.f32 1.5, %v1409
      %v1411 = vmul.f32 %v1406, %v1410
      %vm1412 = vweird.f32 %v1282
      %vm1413 = vweird.f32 %v1406
      %vm1414 = vmor %vm1412, %vm1413
      %v1415 = vsel %vm1414, %v1406, %v1411
      %v1416 = vrsqrt.pop %v1283
      %v1417 = vmul.f32 %v1416, %v1283
      %v1418 = vmul.f32 %v1417, %v1416
      %v1419 = vmul.f32 0.5, %v1418
      %v1420 = vsub.f32 1.5, %v1419
      %v1421 = vmul.f32 %v1416, %v1420
      %vm1422 = vweird.f32 %v1283
      %vm1423 = vweird.f32 %v1416
      %vm1424 = vmor %vm1422, %vm1423
      %v1425 = vsel %vm1424, %v1416, %v1421
      %v1426 = vrsqrt.pop %v1284
      %v1427 = vmul.f32 %v1426, %v1284
      %v1428 = vmul.f32 %v1427, %v1426
      %v1429 = vmul.f32 0.5, %v1428
      %v1430 = vsub.f32 1.5, %v1429
      %v1431 = vmul.f32 %v1426, %v1430
      %vm1432 = vweird.f32 %v1284
      %vm1433 = vweird.f32 %v1426
      %vm1434 = vmor %vm1432, %vm1433
      %v1435 = vsel %vm1434, %v1426, %v1431
      %v1436 = vrsqrt.pop %v1285
      %v1437 = vmul.f32 %v1436, %v1285
      %v1438 = vmul.f32 %v1437, %v1436
      %v1439 = vmul.f32 0.5, %v1438
      %v1440 = vsub.f32 1.5, %v1439
      %v1441 = vmul.f32 %v1436, %v1440
      %vm1442 = vweird.f32 %v1285
      %vm1443 = vweird.f32 %v1436
      %vm1444 = vmor %vm1442, %vm1443
      %v1445 = vsel %vm1444, %v1436, %v1441
      %v1446 = vmul.f32 %v1254, %v1295
      %v1447 = vmul.f32 %v1255, %v1305
      %v1448 = vmul.f32 %v1256, %v1315
      %v1449 = vmul.f32 %v1257, %v1325
      %v1450 = vmul.f32 %v1258, %v1335
      %v1451 = vmul.f32 %v1259, %v1345
      %v1452 = vmul.f32 %v1260, %v1355
      %v1453 = vmul.f32 %v1261, %v1365
      %v1454 = vmul.f32 %v1262, %v1375
      %v1455 = vmul.f32 %v1263, %v1385
      %v1456 = vmul.f32 %v1264, %v1395
      %v1457 = vmul.f32 %v1265, %v1405
      %v1458 = vmul.f32 %v1266, %v1415
      %v1459 = vmul.f32 %v1267, %v1425
      %v1460 = vmul.f32 %v1268, %v1435
      %v1461 = vmul.f32 %v1269, %v1445
      %v1462 = vld [vmem:[%s3] sm:$0x1]
      %v1464 = vperm.slane %v1462, 0
      %v1466 = vmul.f32 %v1446, %v1464
      %v1467 = vmul.f32 %v1447, %v1464
      %v1468 = vmul.f32 %v1448, %v1464
      %v1469 = vmul.f32 %v1449, %v1464
      %v1470 = vmul.f32 %v1450, %v1464
      %v1471 = vmul.f32 %v1451, %v1464
      %v1472 = vmul.f32 %v1452, %v1464
      %v1473 = vmul.f32 %v1453, %v1464
      %v1474 = vmul.f32 %v1454, %v1464
      %v1475 = vmul.f32 %v1455, %v1464
      %v1476 = vmul.f32 %v1456, %v1464
      %v1477 = vmul.f32 %v1457, %v1464
      %v1478 = vmul.f32 %v1458, %v1464
      %v1479 = vmul.f32 %v1459, %v1464
      %v1480 = vmul.f32 %v1460, %v1464
      %v1481 = vmul.f32 %v1461, %v1464
      %v1482 = vld [vmem:[%s4] sm:$0x1]
      %v1484 = vperm.slane %v1482, 0
      %v1486 = vadd.f32 %v1466, %v1484
      %v1487 = vadd.f32 %v1467, %v1484
      %v1488 = vadd.f32 %v1468, %v1484
      %v1489 = vadd.f32 %v1469, %v1484
      %v1490 = vadd.f32 %v1470, %v1484
      %v1491 = vadd.f32 %v1471, %v1484
      %v1492 = vadd.f32 %v1472, %v1484
      %v1493 = vadd.f32 %v1473, %v1484
      %v1494 = vadd.f32 %v1474, %v1484
      %v1495 = vadd.f32 %v1475, %v1484
      %v1496 = vadd.f32 %v1476, %v1484
      %v1497 = vadd.f32 %v1477, %v1484
      %v1498 = vadd.f32 %v1478, %v1484
      %v1499 = vadd.f32 %v1479, %v1484
      %v1500 = vadd.f32 %v1480, %v1484
      %v1501 = vadd.f32 %v1481, %v1484
      %1502 = vst [vmem:[%s226] sm:$0xff] %v1486
      %1503 = vst [vmem:[%s226 + $0x8] sm:$0xff] %v1487
      %1504 = vst [vmem:[%s226 + $0x10] sm:$0xff] %v1488
      %1505 = vst [vmem:[%s226 + $0x18] sm:$0xff] %v1489
      %1506 = vst [vmem:[%s226 + $0x20] sm:$0xff] %v1490
      %1507 = vst [vmem:[%s226 + $0x28] sm:$0xff] %v1491
      %1508 = vst [vmem:[%s226 + $0x30] sm:$0xff] %v1492
      %1509 = vst [vmem:[%s226 + $0x38] sm:$0xff] %v1493
      %1510 = vst [vmem:[%s226 + $0x40] sm:$0xff] %v1494
      %1511 = vst [vmem:[%s226 + $0x48] sm:$0xff] %v1495
      %1512 = vst [vmem:[%s226 + $0x50] sm:$0xff] %v1496
      %1513 = vst [vmem:[%s226 + $0x58] sm:$0xff] %v1497
      %1514 = vst [vmem:[%s226 + $0x60] sm:$0xff] %v1498
      %1515 = vst [vmem:[%s226 + $0x68] sm:$0xff] %v1499
      %1516 = vst [vmem:[%s226 + $0x70] sm:$0xff] %v1500
      %1517 = vst [vmem:[%s226 + $0x78] sm:$0xff] %v1501
      %s1518 = smul.u32 16, %s16
      %p1519 = scmp.lt.s32.totalorder %s1518, 31
      %s1520 = scalar_select %p1519, %s1518, 31
      %s1521 = smul.addr %s1520, 8
      %s1522 = scalar_lea.vmem %s5, %s1521
      // Predicated region
      $region41: #{mlp_block_pallas.1} parent=39 // pred_check
        %p1523 = pneg %p144
      $region42: #{mlp_block_pallas.1} parent=39 // pred_check_branch
        %1525 = sbr.rel (%p1523) target = $region44
      $region43: #{mlp_block_pallas.1} parent=39 // pred_region
        %s1526 = smul.u32 16, %s16
      $region44: #{mlp_block_pallas.1} parent=39 // pred_fallthru
        _
    $region40: #{mlp_block_pallas.1} parent=5 // pred_fallthru
      _
    %p1527 = scmp.le.s32.totalorder 2, %s11
    // Predicated region
    $region45: #{mlp_block_pallas.1} parent=5 // pred_check
      %p1528 = pneg %p1527
    $region46: #{mlp_block_pallas.1} parent=5 // pred_check_branch
      %1530 = sbr.rel (%p1528) target = $region48
    $region47: #{mlp_block_pallas.1} parent=5 // pred_region
      %s1531 = ssub.s32 %s11, 2
      // Predicated region
      $region49: #{mlp_block_pallas.1} parent=47 // pred_check
        %p1532 = pneg %p150
      $region50: #{mlp_block_pallas.1} parent=47 // pred_check_branch
        %1534 = sbr.rel (%p1532) target = $region52
      $region51: #{mlp_block_pallas.1} parent=47 // pred_region
        %s1535 = smul.u32 16, %s17
        %p1536 = scmp.lt.s32.totalorder %s1535, 31
        %s1537 = scalar_select %p1536, %s1535, 31
        %s1538 = smul.addr %s1537, 8
        %s1539 = scalar_lea.vmem %s5, %s1538
      $region52: #{mlp_block_pallas.1} parent=47 // pred_fallthru
        _
    $region48: #{mlp_block_pallas.1} parent=5 // pred_fallthru
      _
  $region6: #{mlp_block_pallas.1} parent=0 // loop_footer
    %s15 = sadd.s32 1, %s11
  $region7: #{mlp_block_pallas.1} parent=0 // loop_footer_branch
    %10 = sbr.rel target = $region3
  $region8: #{mlp_block_pallas.1} parent=0 // loop_exit
    _

</llo_original>
